<compile_context>
chip_gen: v5e
topology: v5e:2x2
jax: 0.10.0
libtpu: 0.0.40
codegen_flags: <defaults>
</compile_context>

<pallas_src>
import functools

import jax
import jax.numpy as jnp
from jax.experimental import pallas as pl
from jax.experimental.pallas import tpu as pltpu

BN_EPS = 1e-5


def _classblock_kernel(x_ref, w_ref, gamma_ref, beta_ref, o_ref):
    # Linear (bias dropped: cancelled by training-mode BN mean subtraction).
    # x: (B, D_in) bf16, w tile: (D_in, TN) bf16 -> f32 accumulation on MXU.
    h = jnp.dot(x_ref[...], w_ref[...], preferred_element_type=jnp.float32)

    # BatchNorm1d, training-mode semantics, per-feature batch statistics.
    # One pass over h: sum + sum-of-squares along the batch (sublane) axis.
    inv_b = 1.0 / h.shape[0]
    s = jnp.sum(h, axis=0, keepdims=True)
    ss = jnp.sum(h * h, axis=0, keepdims=True)
    mean = s * inv_b
    var = ss * inv_b - mean * mean
    inv_std = jax.lax.rsqrt(var + BN_EPS)            # EUP slot (free-ish)

    # Fold gamma * inv_std into one per-feature scale; single scale+shift pass.
    scale = gamma_ref[...] * inv_std
    shift = beta_ref[...] - mean * scale
    o_ref[...] = (h * scale + shift).astype(o_ref.dtype)


@functools.partial(jax.jit, static_argnames=("tn",))
def classblock_arc_forward(x, w, gamma, beta, *, tn=256):
    """squeeze(BN1d(Linear(x))) with training-mode BN statistics.

    x:     (B, D_in)     f32 (cast to bf16 for the matmul operands)
    w:     (D_in, D_bot) f32, stored as W^T of the PyTorch (out, in) layout
    gamma: (1, D_bot)    f32
    beta:  (1, D_bot)    f32
    """
    B, D_in = x.shape
    D_bot = w.shape[1]

    tn = min(tn, D_bot)
    num_tiles = pl.cdiv(D_bot, tn)

    # Weight-read-bound kernel: halve HBM bytes by feeding bf16 to the MXU
    # (accumulation stays f32 via preferred_element_type).
    x_bf = x.astype(jnp.bfloat16)
    w_bf = w.astype(jnp.bfloat16)

    out = pl.pallas_call(
        _classblock_kernel,
        out_shape=jax.ShapeDtypeStruct((B, D_bot), jnp.float32),
        grid_spec=pltpu.PrefetchScalarGridSpec(
            num_scalar_prefetch=0,
            grid=(num_tiles,),
            in_specs=[
                # x stays resident in VMEM across the feature tiles.
                pl.BlockSpec((B, D_in), lambda j: (0, 0)),
                # Weight columns / BN params tiled over the feature axis
                # (double-buffered by the BlockSpec pipeline).
                pl.BlockSpec((D_in, tn), lambda j: (0, j)),
                pl.BlockSpec((1, tn), lambda j: (0, j)),
                pl.BlockSpec((1, tn), lambda j: (0, j)),
            ],
            out_specs=pl.BlockSpec((B, tn), lambda j: (0, j)),
        ),
        compiler_params=pltpu.CompilerParams(
            # Feature tiles are independent (per-feature BN stats), so the
            # axis is parallel -> both TensorCores on v7x take tiles.
            dimension_semantics=("parallel",),
            # Safe headroom on v5e/v6e (128 MiB phys) and v7x (64 MiB phys).
            vmem_limit_bytes=48 << 20,
        ),
    )(x_bf, w_bf, gamma, beta)

    # torch.squeeze: remove all size-1 dims (no-op for B > 1, D_bot > 1).
    return jnp.squeeze(out)


def init_params(key, input_dim, num_bottleneck):
    """Deterministic init mirroring weights_init_kaiming."""
    k_w, k_g = jax.random.split(key)
    # Linear: kaiming_normal, a=0, mode='fan_out' -> std = sqrt(2 / fan_out).
    std_w = (2.0 / num_bottleneck) ** 0.5
    # PyTorch stores Linear weight as (out, in); we keep (in, out) == W^T.
    w = std_w * jax.random.normal(k_w, (input_dim, num_bottleneck), jnp.float32)
    # Linear bias is init'd to 0 and is cancelled by training-mode BN anyway;
    # kept only for the reference check.
    b = jnp.zeros((1, num_bottleneck), jnp.float32)
    # BatchNorm1d: weight ~ N(1.0, 0.02), bias = 0.
    gamma = 1.0 + 0.02 * jax.random.normal(k_g, (1, num_bottleneck), jnp.float32)
    beta = jnp.zeros((1, num_bottleneck), jnp.float32)
    return w, b, gamma, beta


if __name__ == "__main__":
    # Small shapes consistent with the module (NASNet features -> 4032-dim
    # pooled vector -> 512 bottleneck).  Scaled-down D_in, real num_bottleneck,
    # lane-dense (multiple-of-128) feature dims.
    B, D_IN, D_BOT, TN = 8, 1024, 512, 256

    key = jax.random.PRNGKey(0)
    k_x, k_p = jax.random.split(key)
    x = jax.random.normal(k_x, (B, D_IN), jnp.float32)
    w, b, gamma, beta = init_params(k_p, D_IN, D_BOT)

    out = classblock_arc_forward(x, w, gamma, beta, tn=TN)
    jax.block_until_ready(out)
    assert out.shape == (B, D_BOT)

    # Pure-JAX reference of the same math (bf16 matmul operands, f32 acc,
    # training-mode BN *including* the bias to show it cancels).
    h_ref = jnp.dot(x.astype(jnp.bfloat16), w.astype(jnp.bfloat16),
                    preferred_element_type=jnp.float32) + b
    m = h_ref.mean(axis=0, keepdims=True)
    v = ((h_ref - m) ** 2).mean(axis=0, keepdims=True)
    ref = jnp.squeeze((h_ref - m) / jnp.sqrt(v + BN_EPS) * gamma + beta)

    assert jnp.allclose(out, ref, atol=1e-2, rtol=1e-2), (
        float(jnp.max(jnp.abs(out - ref))))

    print("KERNEL_OK")
</pallas_src>

<mosaic_0001>
module attributes {stable_mosaic.version = 11 : i64} {
  func.func @_classblock_kernel(%arg0: i32, %arg1: memref<8x1024xbf16, #tpu.memory_space<vmem>>, %arg2: memref<1024x256xbf16, #tpu.memory_space<vmem>>, %arg3: memref<1x256xf32, #tpu.memory_space<vmem>>, %arg4: memref<1x256xf32, #tpu.memory_space<vmem>>, %arg5: memref<8x256xf32, #tpu.memory_space<vmem>>) attributes {dimension_semantics = [#tpu.dimension_semantics<parallel>], iteration_bounds = array<i64: 2>, scalar_prefetch = 0 : i64, scratch_operands = 0 : i64, tpu.core_type = #tpu.core_type<tc>, window_params = [{pipeline_mode = #tpu.pipeline_mode<synchronous>, transform_indices = @transform_0, window_bounds = array<i64: 8, 1024>}, {transform_indices = @transform_1, window_bounds = array<i64: 1024, 256>}, {transform_indices = @transform_2, window_bounds = array<i64: 1, 256>}, {transform_indices = @transform_3, window_bounds = array<i64: 1, 256>}, {transform_indices = @transform_4, window_bounds = array<i64: 8, 256>}]} {
    %c0 = arith.constant 0 : index
    %c0_0 = arith.constant 0 : index
    %0 = vector.load %arg1[%c0, %c0_0] : memref<8x1024xbf16, #tpu.memory_space<vmem>>, vector<8x1024xbf16>
    %c0_1 = arith.constant 0 : index
    %c0_2 = arith.constant 0 : index
    %1 = vector.load %arg2[%c0_1, %c0_2] : memref<1024x256xbf16, #tpu.memory_space<vmem>>, vector<1024x256xbf16>
    %cst = arith.constant dense<0.000000e+00> : vector<8x256xf32>
    %2 = tpu.matmul %0, %1, %cst {dimension_numbers = #tpu.dot_dimension_numbers<[1], [0], [0], [1], [0, 0, 1, 1], [], []>} : vector<8x1024xbf16>, vector<1024x256xbf16>, vector<8x256xf32> -> vector<8x256xf32>
    %cst_3 = arith.constant dense<0.000000e+00> : vector<256xf32>
    %3 = vector.multi_reduction <add>, %2, %cst_3 [0] : vector<8x256xf32> to vector<256xf32>
    %4 = vector.shape_cast %3 : vector<256xf32> to vector<1x256xf32>
    %5 = arith.mulf %2, %2 : vector<8x256xf32>
    %cst_4 = arith.constant dense<0.000000e+00> : vector<256xf32>
    %6 = vector.multi_reduction <add>, %5, %cst_4 [0] : vector<8x256xf32> to vector<256xf32>
    %7 = vector.shape_cast %6 : vector<256xf32> to vector<1x256xf32>
    %cst_5 = arith.constant 1.250000e-01 : f32
    %8 = vector.broadcast %cst_5 : f32 to vector<1x256xf32>
    %9 = arith.mulf %4, %8 : vector<1x256xf32>
    %cst_6 = arith.constant 1.250000e-01 : f32
    %10 = vector.broadcast %cst_6 : f32 to vector<1x256xf32>
    %11 = arith.mulf %7, %10 : vector<1x256xf32>
    %12 = arith.mulf %9, %9 : vector<1x256xf32>
    %13 = arith.subf %11, %12 : vector<1x256xf32>
    %cst_7 = arith.constant 9.99999974E-6 : f32
    %14 = vector.broadcast %cst_7 : f32 to vector<1x256xf32>
    %15 = arith.addf %13, %14 : vector<1x256xf32>
    %16 = math.rsqrt %15 : vector<1x256xf32>
    %c0_8 = arith.constant 0 : index
    %c0_9 = arith.constant 0 : index
    %17 = vector.load %arg3[%c0_8, %c0_9] : memref<1x256xf32, #tpu.memory_space<vmem>>, vector<1x256xf32>
    %18 = arith.mulf %17, %16 : vector<1x256xf32>
    %c0_10 = arith.constant 0 : index
    %c0_11 = arith.constant 0 : index
    %19 = vector.load %arg4[%c0_10, %c0_11] : memref<1x256xf32, #tpu.memory_space<vmem>>, vector<1x256xf32>
    %20 = arith.mulf %9, %18 : vector<1x256xf32>
    %21 = arith.subf %19, %20 : vector<1x256xf32>
    %22 = vector.broadcast %18 : vector<1x256xf32> to vector<8x256xf32>
    %23 = arith.mulf %2, %22 : vector<8x256xf32>
    %24 = vector.broadcast %21 : vector<1x256xf32> to vector<8x256xf32>
    %25 = arith.addf %23, %24 : vector<8x256xf32>
    %c0_12 = arith.constant 0 : index
    %c0_13 = arith.constant 0 : index
    %26 = vector.load %arg5[%c0_12, %c0_13] : memref<8x256xf32, #tpu.memory_space<vmem>>, vector<8x256xf32>
    tpu.vector_store %arg5[%c0_12, %c0_13], %25 {strides = array<i32>} : memref<8x256xf32, #tpu.memory_space<vmem>>, vector<8x256xf32>,
    return
  }
  func.func @transform_0(%arg0: i32) -> (i32, i32) {
    %c0_i32 = arith.constant 0 : i32
    %c0_i32_0 = arith.constant 0 : i32
    %c0_i32_1 = arith.constant 0 : i32
    return %c0_i32, %c0_i32_0 : i32, i32
  }
  func.func @transform_1(%arg0: i32) -> (i32, i32) {
    %c0_i32 = arith.constant 0 : i32
    %c0_i32_0 = arith.constant 0 : i32
    return %c0_i32, %arg0 : i32, i32
  }
  func.func @transform_2(%arg0: i32) -> (i32, i32) {
    %c0_i32 = arith.constant 0 : i32
    %c0_i32_0 = arith.constant 0 : i32
    return %c0_i32, %arg0 : i32, i32
  }
  func.func @transform_3(%arg0: i32) -> (i32, i32) {
    %c0_i32 = arith.constant 0 : i32
    %c0_i32_0 = arith.constant 0 : i32
    return %c0_i32, %arg0 : i32, i32
  }
  func.func @transform_4(%arg0: i32) -> (i32, i32) {
    %c0_i32 = arith.constant 0 : i32
    %c0_i32_0 = arith.constant 0 : i32
    return %c0_i32, %arg0 : i32, i32
  }
}

</mosaic_0001>

<llo_original>
// kernel: classblock_arc_forward.1
$region0: #{classblock_arc_forward.1}
  #allocation0 [shape = 'u32[]', space=smem, size = 0x4, offset = 0x4, fixed_abs, tag = 'smem constant byte address 0x4 - core index']
  #allocation1 [shape = 'u32[72,128]{1,0:T(1,128)}', space=vmem, size = 0x9000, scoped, tag = 'internal scratch']
  %s0 = inlined_call_operand.vmem [shape: bf16[8,1024], index: 0, kind: input, shape index: {}]
  %s1 = inlined_call_operand.vmem [shape: bf16[1024,512], index: 1, kind: input, shape index: {}]
  %s2 = inlined_call_operand.vmem [shape: f32[1,512], index: 2, kind: input, shape index: {}]
  %s3 = inlined_call_operand.vmem [shape: f32[1,512], index: 3, kind: input, shape index: {}]
  %s4 = inlined_call_operand.hbm [shape: f32[8,512], index: 4, kind: output, shape index: {}]
  %s5 = sld [smem:[#allocation0]]
  $region87: #{classblock_arc_forward.1} parent=0
    _
  %s7 = ssub.s32 1, %s5
  %s8 = scalar_select 0, %s7, %s5
  $region1: #{classblock_arc_forward.1} parent=0
    #allocation2 [shape = 'u8[1048576]{0}', space=vmem, size = 0x100000, scoped, tag = 'input window, operand 1']
    #allocation3 [shape = 'u8[16384]{0}', space=vmem, size = 0x4000, scoped, tag = 'output window, operand 0']
    #allocation4 [shape = 's32[2]{0}', space=sflag, size = 0x8, scoped, tag = 'scoped memory for classblock_arc_forward.1']
    %9 = vsyncpa [#allocation4], 0
    %s10 = scalar_lea.sflag [#allocation4], 1
    %11 = vsyncpa %s10, 0
    loop: start=0, step=1, limit=4
    $region2: #{classblock_arc_forward.1} parent=1 // loop_pre_header
      _
    $region3: #{classblock_arc_forward.1} parent=1 // loop_header
      %s13 = sphi 0, %s17
      %p14 = scmp.ge.s32.totalorder %s13, 4
      %s21 = sphi 0, %s21
      %s23 = sphi 0, %s21
      %s24 = sphi 0, %s23
      %s38 = sphi 0, %s24
      %s44 = sphi 0, %s46
      %s47 = sphi 0, %s44
      %s48 = sphi 0, %s47
      %s64 = sphi 0, %s48
      %s70 = sphi 0, %s72
      %s73 = sphi 0, %s70
      %s74 = sphi 0, %s73
      %s90 = sphi 0, %s74
      %s96 = sphi 0, %s98
      %s99 = sphi 0, %s96
      %s100 = sphi 0, %s99
      %s116 = sphi 0, %s100
      %s122 = sphi 0, %s124
      %s125 = sphi 0, %s122
      %s126 = sphi 0, %s125
      %s142 = sphi 0, %s126
    $region4: #{classblock_arc_forward.1} parent=1 // loop_header_branch
      %16 = sbr.rel (%p14) target = $region8
    $region5: #{classblock_arc_forward.1} parent=1 // loop_body
      %s18 = ssub.s32 %s13, 1
      %s19 = ssub.s32 %s13, 2
      %s20 = sadd.s32 %s13, 1
      %s22 = sadd.s32 %s21, 1
      %p25 = scmp.eq.s32.totalorder %s13, 1
      %p26 = scmp.ne.s32.totalorder %s21, %s23
      %p27 = scmp.eq.s32.totalorder %s13, 0
      %p28 = por %p26, %p27
      %p29 = scmp.ne.s32.totalorder %s21, %s23
      %p30 = scmp.eq.s32.totalorder %s18, 1
      %p31 = por %p29, %p30
      %p32 = scmp.ne.s32.totalorder %s23, %s24
      %p33 = scmp.eq.s32.totalorder %s18, 0
      %p34 = por %p32, %p33
      %p35 = scmp.ne.s32.totalorder %s23, %s24
      %p36 = scmp.eq.s32.totalorder %s19, 1
      %p37 = por %p35, %p36
      %p39 = scmp.ne.s32.totalorder %s24, %s38
      %p40 = scmp.eq.s32.totalorder %s19, 0
      %p41 = por %p39, %p40
      %s42 = ssub.s32 %s13, %s20
      %p43 = scmp.eq.s32.totalorder %s42, 0
      %s45 = sadd.s32 %s44, 1
      %s46 = scalar_select %p43, %s44, %s45
      %p49 = pneg %p43
      %p50 = scmp.eq.s32.totalorder %s13, 1
      %p51 = por %p49, %p50
      %p52 = scmp.ne.s32.totalorder %s44, %s47
      %p53 = scmp.eq.s32.totalorder %s13, 0
      %p54 = por %p52, %p53
      %p55 = scmp.ne.s32.totalorder %s44, %s47
      %p56 = scmp.eq.s32.totalorder %s18, 1
      %p57 = por %p55, %p56
      %p58 = scmp.ne.s32.totalorder %s47, %s48
      %p59 = scmp.eq.s32.totalorder %s18, 0
      %p60 = por %p58, %p59
      %p61 = scmp.ne.s32.totalorder %s47, %s48
      %p62 = scmp.eq.s32.totalorder %s19, 1
      %p63 = por %p61, %p62
      %p65 = scmp.ne.s32.totalorder %s48, %s64
      %p66 = scmp.eq.s32.totalorder %s19, 0
      %p67 = por %p65, %p66
      %s68 = ssub.s32 %s13, %s20
      %p69 = scmp.eq.s32.totalorder %s68, 0
      %s71 = sadd.s32 %s70, 1
      %s72 = scalar_select %p69, %s70, %s71
      %p75 = pneg %p69
      %p76 = scmp.eq.s32.totalorder %s13, 1
      %p77 = por %p75, %p76
      %p78 = scmp.ne.s32.totalorder %s70, %s73
      %p79 = scmp.eq.s32.totalorder %s13, 0
      %p80 = por %p78, %p79
      %p81 = scmp.ne.s32.totalorder %s70, %s73
      %p82 = scmp.eq.s32.totalorder %s18, 1
      %p83 = por %p81, %p82
      %p84 = scmp.ne.s32.totalorder %s73, %s74
      %p85 = scmp.eq.s32.totalorder %s18, 0
      %p86 = por %p84, %p85
      %p87 = scmp.ne.s32.totalorder %s73, %s74
      %p88 = scmp.eq.s32.totalorder %s19, 1
      %p89 = por %p87, %p88
      %p91 = scmp.ne.s32.totalorder %s74, %s90
      %p92 = scmp.eq.s32.totalorder %s19, 0
      %p93 = por %p91, %p92
      %s94 = ssub.s32 %s13, %s20
      %p95 = scmp.eq.s32.totalorder %s94, 0
      %s97 = sadd.s32 %s96, 1
      %s98 = scalar_select %p95, %s96, %s97
      %p101 = pneg %p95
      %p102 = scmp.eq.s32.totalorder %s13, 1
      %p103 = por %p101, %p102
      %p104 = scmp.ne.s32.totalorder %s96, %s99
      %p105 = scmp.eq.s32.totalorder %s13, 0
      %p106 = por %p104, %p105
      %p107 = scmp.ne.s32.totalorder %s96, %s99
      %p108 = scmp.eq.s32.totalorder %s18, 1
      %p109 = por %p107, %p108
      %p110 = scmp.ne.s32.totalorder %s99, %s100
      %p111 = scmp.eq.s32.totalorder %s18, 0
      %p112 = por %p110, %p111
      %p113 = scmp.ne.s32.totalorder %s99, %s100
      %p114 = scmp.eq.s32.totalorder %s19, 1
      %p115 = por %p113, %p114
      %p117 = scmp.ne.s32.totalorder %s100, %s116
      %p118 = scmp.eq.s32.totalorder %s19, 0
      %p119 = por %p117, %p118
      %s120 = ssub.s32 %s13, %s20
      %p121 = scmp.eq.s32.totalorder %s120, 0
      %s123 = sadd.s32 %s122, 1
      %s124 = scalar_select %p121, %s122, %s123
      %p127 = pneg %p121
      %p128 = scmp.eq.s32.totalorder %s13, 1
      %p129 = por %p127, %p128
      %p130 = scmp.ne.s32.totalorder %s122, %s125
      %p131 = scmp.eq.s32.totalorder %s13, 0
      %p132 = por %p130, %p131
      %p133 = scmp.ne.s32.totalorder %s122, %s125
      %p134 = scmp.eq.s32.totalorder %s18, 1
      %p135 = por %p133, %p134
      %p136 = scmp.ne.s32.totalorder %s125, %s126
      %p137 = scmp.eq.s32.totalorder %s18, 0
      %p138 = por %p136, %p137
      %p139 = scmp.ne.s32.totalorder %s125, %s126
      %p140 = scmp.eq.s32.totalorder %s19, 1
      %p141 = por %p139, %p140
      %p143 = scmp.ne.s32.totalorder %s126, %s142
      %p144 = scmp.eq.s32.totalorder %s19, 0
      %p145 = por %p143, %p144
      %p146 = scmp.le.s32.totalorder 1, %s13
      %p147 = scmp.lt.s32.totalorder %s13, 3
      %p148 = pnand %p146, %p147
      %p149 = pneg %p148
      // Predicated region
      $region9: #{classblock_arc_forward.1} parent=5 // pred_check
        _
      $region10: #{classblock_arc_forward.1} parent=5 // pred_check_branch
        %151 = sbr.rel (%p148) target = $region12
      $region11: #{classblock_arc_forward.1} parent=5 // pred_region
        %s152 = ssub.s32 %s13, 1
        // Predicated region
        $region13: #{classblock_arc_forward.1} parent=11 // pred_check
          %p153 = pneg %p34
        $region14: #{classblock_arc_forward.1} parent=11 // pred_check_branch
          %155 = sbr.rel (%p153) target = $region16
        $region15: #{classblock_arc_forward.1} parent=11 // pred_region
          _
        $region16: #{classblock_arc_forward.1} parent=11 // pred_fallthru
          _
      $region12: #{classblock_arc_forward.1} parent=5 // pred_fallthru
        _
      %p156 = scmp.lt.s32.totalorder %s13, 2
      // Predicated region
      $region17: #{classblock_arc_forward.1} parent=5 // pred_check
        %p157 = pneg %p156
      $region18: #{classblock_arc_forward.1} parent=5 // pred_check_branch
        %159 = sbr.rel (%p157) target = $region20
      $region19: #{classblock_arc_forward.1} parent=5 // pred_region
        // Predicated region
        $region21: #{classblock_arc_forward.1} parent=19 // pred_check
          %p160 = pneg %p54
        $region22: #{classblock_arc_forward.1} parent=19 // pred_check_branch
          %162 = sbr.rel (%p160) target = $region24
        $region23: #{classblock_arc_forward.1} parent=19 // pred_region
          %s163 = sand.u32 %s44, 1
          %s164 = sand.u32 %s44, 1
          %s165 = smul.addr %s164, 1024
          %s166 = scalar_lea.vmem [#allocation2], %s165
          %s167 = smul.u32 2, %s13
          %s168 = smul.addr %s167, 4
          %s169 = scalar_lea.vmem %s1, %s168
          // Predicated region
          $region25: #{classblock_arc_forward.1} parent=23 // pred_check
            _
          $region26: #{classblock_arc_forward.1} parent=23 // pred_check_branch
            %171 = sbr.rel (0) target = $region28
          $region27: #{classblock_arc_forward.1} parent=23 // pred_region
            // Predicated region
            $region29: #{classblock_arc_forward.1} parent=27 // pred_check
              _
            $region30: #{classblock_arc_forward.1} parent=27 // pred_check_branch
              %173 = sbr.rel (0) target = $region32
            $region31: #{classblock_arc_forward.1} parent=27 // pred_region
              // Predicated region
              $region44: #{classblock_arc_forward.1} parent=31 // pred_check
                _
              $region45: #{classblock_arc_forward.1} parent=31 // pred_check_branch
                %443 = sbr.rel (0) target = $region47
              $region46: #{classblock_arc_forward.1} parent=31 // pred_region
                loop: start=0, step=1, limit=1
                $region48: #{classblock_arc_forward.1} parent=46 // loop_pre_header
                  _
                $region49: #{classblock_arc_forward.1} parent=46 // loop_header
                  %s445 = sphi 0, %s449
                  %p446 = scmp.ge.s32.totalorder %s445, 1
                  %s450 = sphi %s169, %s169
                  %s451 = sphi %s166, %s166
                $region50: #{classblock_arc_forward.1} parent=46 // loop_header_branch
                  %448 = sbr.rel (%p446) target = $region54
                $region51: #{classblock_arc_forward.1} parent=46 // loop_body
                  %v452 = vld [vmem:[%s450] sm:$0xff]
                  %453 = vst [vmem:[%s451] sm:$0xff] %v452
                  %v454 = vld [vmem:[%s450 + $0x10] sm:$0xff]
                  %455 = vst [vmem:[%s451 + $0x8] sm:$0xff] %v454
                  %v456 = vld [vmem:[%s450 + $0x20] sm:$0xff]
                  %457 = vst [vmem:[%s451 + $0x10] sm:$0xff] %v456
                  %v458 = vld [vmem:[%s450 + $0x30] sm:$0xff]
                  %459 = vst [vmem:[%s451 + $0x18] sm:$0xff] %v458
                  %v460 = vld [vmem:[%s450 + $0x40] sm:$0xff]
                  %461 = vst [vmem:[%s451 + $0x20] sm:$0xff] %v460
                  %v462 = vld [vmem:[%s450 + $0x50] sm:$0xff]
                  %463 = vst [vmem:[%s451 + $0x28] sm:$0xff] %v462
                  %v464 = vld [vmem:[%s450 + $0x60] sm:$0xff]
                  %465 = vst [vmem:[%s451 + $0x30] sm:$0xff] %v464
                  %v466 = vld [vmem:[%s450 + $0x70] sm:$0xff]
                  %467 = vst [vmem:[%s451 + $0x38] sm:$0xff] %v466
                  %v468 = vld [vmem:[%s450 + $0x80] sm:$0xff]
                  %469 = vst [vmem:[%s451 + $0x40] sm:$0xff] %v468
                  %v470 = vld [vmem:[%s450 + $0x90] sm:$0xff]
                  %471 = vst [vmem:[%s451 + $0x48] sm:$0xff] %v470
                  %v472 = vld [vmem:[%s450 + $0xa0] sm:$0xff]
                  %473 = vst [vmem:[%s451 + $0x50] sm:$0xff] %v472
                  %v474 = vld [vmem:[%s450 + $0xb0] sm:$0xff]
                  %475 = vst [vmem:[%s451 + $0x58] sm:$0xff] %v474
                  %v476 = vld [vmem:[%s450 + $0xc0] sm:$0xff]
                  %477 = vst [vmem:[%s451 + $0x60] sm:$0xff] %v476
                  %v478 = vld [vmem:[%s450 + $0xd0] sm:$0xff]
                  %479 = vst [vmem:[%s451 + $0x68] sm:$0xff] %v478
                  %v480 = vld [vmem:[%s450 + $0xe0] sm:$0xff]
                  %481 = vst [vmem:[%s451 + $0x70] sm:$0xff] %v480
                  %v482 = vld [vmem:[%s450 + $0xf0] sm:$0xff]
                  %483 = vst [vmem:[%s451 + $0x78] sm:$0xff] %v482
                  %v484 = vld [vmem:[%s450 + $0x100] sm:$0xff]
                  %485 = vst [vmem:[%s451 + $0x80] sm:$0xff] %v484
                  %v486 = vld [vmem:[%s450 + $0x110] sm:$0xff]
                  %487 = vst [vmem:[%s451 + $0x88] sm:$0xff] %v486
                  %v488 = vld [vmem:[%s450 + $0x120] sm:$0xff]
                  %489 = vst [vmem:[%s451 + $0x90] sm:$0xff] %v488
                  %v490 = vld [vmem:[%s450 + $0x130] sm:$0xff]
                  %491 = vst [vmem:[%s451 + $0x98] sm:$0xff] %v490
                  %v492 = vld [vmem:[%s450 + $0x140] sm:$0xff]
                  %493 = vst [vmem:[%s451 + $0xa0] sm:$0xff] %v492
                  %v494 = vld [vmem:[%s450 + $0x150] sm:$0xff]
                  %495 = vst [vmem:[%s451 + $0xa8] sm:$0xff] %v494
                  %v496 = vld [vmem:[%s450 + $0x160] sm:$0xff]
                  %497 = vst [vmem:[%s451 + $0xb0] sm:$0xff] %v496
                  %v498 = vld [vmem:[%s450 + $0x170] sm:$0xff]
                  %499 = vst [vmem:[%s451 + $0xb8] sm:$0xff] %v498
                  %v500 = vld [vmem:[%s450 + $0x180] sm:$0xff]
                  %501 = vst [vmem:[%s451 + $0xc0] sm:$0xff] %v500
                  %v502 = vld [vmem:[%s450 + $0x190] sm:$0xff]
                  %503 = vst [vmem:[%s451 + $0xc8] sm:$0xff] %v502
                  %v504 = vld [vmem:[%s450 + $0x1a0] sm:$0xff]
                  %505 = vst [vmem:[%s451 + $0xd0] sm:$0xff] %v504
                  %v506 = vld [vmem:[%s450 + $0x1b0] sm:$0xff]
                  %507 = vst [vmem:[%s451 + $0xd8] sm:$0xff] %v506
                  %v508 = vld [vmem:[%s450 + $0x1c0] sm:$0xff]
                  %509 = vst [vmem:[%s451 + $0xe0] sm:$0xff] %v508
                  %v510 = vld [vmem:[%s450 + $0x1d0] sm:$0xff]
                  %511 = vst [vmem:[%s451 + $0xe8] sm:$0xff] %v510
                  %v512 = vld [vmem:[%s450 + $0x1e0] sm:$0xff]
                  %513 = vst [vmem:[%s451 + $0xf0] sm:$0xff] %v512
                  %v514 = vld [vmem:[%s450 + $0x1f0] sm:$0xff]
                  %515 = vst [vmem:[%s451 + $0xf8] sm:$0xff] %v514
                  %v516 = vld [vmem:[%s450 + $0x200] sm:$0xff]
                  %517 = vst [vmem:[%s451 + $0x100] sm:$0xff] %v516
                  %v518 = vld [vmem:[%s450 + $0x210] sm:$0xff]
                  %519 = vst [vmem:[%s451 + $0x108] sm:$0xff] %v518
                  %v520 = vld [vmem:[%s450 + $0x220] sm:$0xff]
                  %521 = vst [vmem:[%s451 + $0x110] sm:$0xff] %v520
                  %v522 = vld [vmem:[%s450 + $0x230] sm:$0xff]
                  %523 = vst [vmem:[%s451 + $0x118] sm:$0xff] %v522
                  %v524 = vld [vmem:[%s450 + $0x240] sm:$0xff]
                  %525 = vst [vmem:[%s451 + $0x120] sm:$0xff] %v524
                  %v526 = vld [vmem:[%s450 + $0x250] sm:$0xff]
                  %527 = vst [vmem:[%s451 + $0x128] sm:$0xff] %v526
                  %v528 = vld [vmem:[%s450 + $0x260] sm:$0xff]
                  %529 = vst [vmem:[%s451 + $0x130] sm:$0xff] %v528
                  %v530 = vld [vmem:[%s450 + $0x270] sm:$0xff]
                  %531 = vst [vmem:[%s451 + $0x138] sm:$0xff] %v530
                  %v532 = vld [vmem:[%s450 + $0x280] sm:$0xff]
                  %533 = vst [vmem:[%s451 + $0x140] sm:$0xff] %v532
                  %v534 = vld [vmem:[%s450 + $0x290] sm:$0xff]
                  %535 = vst [vmem:[%s451 + $0x148] sm:$0xff] %v534
                  %v536 = vld [vmem:[%s450 + $0x2a0] sm:$0xff]
                  %537 = vst [vmem:[%s451 + $0x150] sm:$0xff] %v536
                  %v538 = vld [vmem:[%s450 + $0x2b0] sm:$0xff]
                  %539 = vst [vmem:[%s451 + $0x158] sm:$0xff] %v538
                  %v540 = vld [vmem:[%s450 + $0x2c0] sm:$0xff]
                  %541 = vst [vmem:[%s451 + $0x160] sm:$0xff] %v540
                  %v542 = vld [vmem:[%s450 + $0x2d0] sm:$0xff]
                  %543 = vst [vmem:[%s451 + $0x168] sm:$0xff] %v542
                  %v544 = vld [vmem:[%s450 + $0x2e0] sm:$0xff]
                  %545 = vst [vmem:[%s451 + $0x170] sm:$0xff] %v544
                  %v546 = vld [vmem:[%s450 + $0x2f0] sm:$0xff]
                  %547 = vst [vmem:[%s451 + $0x178] sm:$0xff] %v546
                  %v548 = vld [vmem:[%s450 + $0x300] sm:$0xff]
                  %549 = vst [vmem:[%s451 + $0x180] sm:$0xff] %v548
                  %v550 = vld [vmem:[%s450 + $0x310] sm:$0xff]
                  %551 = vst [vmem:[%s451 + $0x188] sm:$0xff] %v550
                  %v552 = vld [vmem:[%s450 + $0x320] sm:$0xff]
                  %553 = vst [vmem:[%s451 + $0x190] sm:$0xff] %v552
                  %v554 = vld [vmem:[%s450 + $0x330] sm:$0xff]
                  %555 = vst [vmem:[%s451 + $0x198] sm:$0xff] %v554
                  %v556 = vld [vmem:[%s450 + $0x340] sm:$0xff]
                  %557 = vst [vmem:[%s451 + $0x1a0] sm:$0xff] %v556
                  %v558 = vld [vmem:[%s450 + $0x350] sm:$0xff]
                  %559 = vst [vmem:[%s451 + $0x1a8] sm:$0xff] %v558
                  %v560 = vld [vmem:[%s450 + $0x360] sm:$0xff]
                  %561 = vst [vmem:[%s451 + $0x1b0] sm:$0xff] %v560
                  %v562 = vld [vmem:[%s450 + $0x370] sm:$0xff]
                  %563 = vst [vmem:[%s451 + $0x1b8] sm:$0xff] %v562
                  %v564 = vld [vmem:[%s450 + $0x380] sm:$0xff]
                  %565 = vst [vmem:[%s451 + $0x1c0] sm:$0xff] %v564
                  %v566 = vld [vmem:[%s450 + $0x390] sm:$0xff]
                  %567 = vst [vmem:[%s451 + $0x1c8] sm:$0xff] %v566
                  %v568 = vld [vmem:[%s450 + $0x3a0] sm:$0xff]
                  %569 = vst [vmem:[%s451 + $0x1d0] sm:$0xff] %v568
                  %v570 = vld [vmem:[%s450 + $0x3b0] sm:$0xff]
                  %571 = vst [vmem:[%s451 + $0x1d8] sm:$0xff] %v570
                  %v572 = vld [vmem:[%s450 + $0x3c0] sm:$0xff]
                  %573 = vst [vmem:[%s451 + $0x1e0] sm:$0xff] %v572
                  %v574 = vld [vmem:[%s450 + $0x3d0] sm:$0xff]
                  %575 = vst [vmem:[%s451 + $0x1e8] sm:$0xff] %v574
                  %v576 = vld [vmem:[%s450 + $0x3e0] sm:$0xff]
                  %577 = vst [vmem:[%s451 + $0x1f0] sm:$0xff] %v576
                  %v578 = vld [vmem:[%s450 + $0x3f0] sm:$0xff]
                  %579 = vst [vmem:[%s451 + $0x1f8] sm:$0xff] %v578
                  %v580 = vld [vmem:[%s450 + $0x400] sm:$0xff]
                  %581 = vst [vmem:[%s451 + $0x200] sm:$0xff] %v580
                  %v582 = vld [vmem:[%s450 + $0x410] sm:$0xff]
                  %583 = vst [vmem:[%s451 + $0x208] sm:$0xff] %v582
                  %v584 = vld [vmem:[%s450 + $0x420] sm:$0xff]
                  %585 = vst [vmem:[%s451 + $0x210] sm:$0xff] %v584
                  %v586 = vld [vmem:[%s450 + $0x430] sm:$0xff]
                  %587 = vst [vmem:[%s451 + $0x218] sm:$0xff] %v586
                  %v588 = vld [vmem:[%s450 + $0x440] sm:$0xff]
                  %589 = vst [vmem:[%s451 + $0x220] sm:$0xff] %v588
                  %v590 = vld [vmem:[%s450 + $0x450] sm:$0xff]
                  %591 = vst [vmem:[%s451 + $0x228] sm:$0xff] %v590
                  %v592 = vld [vmem:[%s450 + $0x460] sm:$0xff]
                  %593 = vst [vmem:[%s451 + $0x230] sm:$0xff] %v592
                  %v594 = vld [vmem:[%s450 + $0x470] sm:$0xff]
                  %595 = vst [vmem:[%s451 + $0x238] sm:$0xff] %v594
                  %v596 = vld [vmem:[%s450 + $0x480] sm:$0xff]
                  %597 = vst [vmem:[%s451 + $0x240] sm:$0xff] %v596
                  %v598 = vld [vmem:[%s450 + $0x490] sm:$0xff]
                  %599 = vst [vmem:[%s451 + $0x248] sm:$0xff] %v598
                  %v600 = vld [vmem:[%s450 + $0x4a0] sm:$0xff]
                  %601 = vst [vmem:[%s451 + $0x250] sm:$0xff] %v600
                  %v602 = vld [vmem:[%s450 + $0x4b0] sm:$0xff]
                  %603 = vst [vmem:[%s451 + $0x258] sm:$0xff] %v602
                  %v604 = vld [vmem:[%s450 + $0x4c0] sm:$0xff]
                  %605 = vst [vmem:[%s451 + $0x260] sm:$0xff] %v604
                  %v606 = vld [vmem:[%s450 + $0x4d0] sm:$0xff]
                  %607 = vst [vmem:[%s451 + $0x268] sm:$0xff] %v606
                  %v608 = vld [vmem:[%s450 + $0x4e0] sm:$0xff]
                  %609 = vst [vmem:[%s451 + $0x270] sm:$0xff] %v608
                  %v610 = vld [vmem:[%s450 + $0x4f0] sm:$0xff]
                  %611 = vst [vmem:[%s451 + $0x278] sm:$0xff] %v610
                  %v612 = vld [vmem:[%s450 + $0x500] sm:$0xff]
                  %613 = vst [vmem:[%s451 + $0x280] sm:$0xff] %v612
                  %v614 = vld [vmem:[%s450 + $0x510] sm:$0xff]
                  %615 = vst [vmem:[%s451 + $0x288] sm:$0xff] %v614
                  %v616 = vld [vmem:[%s450 + $0x520] sm:$0xff]
                  %617 = vst [vmem:[%s451 + $0x290] sm:$0xff] %v616
                  %v618 = vld [vmem:[%s450 + $0x530] sm:$0xff]
                  %619 = vst [vmem:[%s451 + $0x298] sm:$0xff] %v618
                  %v620 = vld [vmem:[%s450 + $0x540] sm:$0xff]
                  %621 = vst [vmem:[%s451 + $0x2a0] sm:$0xff] %v620
                  %v622 = vld [vmem:[%s450 + $0x550] sm:$0xff]
                  %623 = vst [vmem:[%s451 + $0x2a8] sm:$0xff] %v622
                  %v624 = vld [vmem:[%s450 + $0x560] sm:$0xff]
                  %625 = vst [vmem:[%s451 + $0x2b0] sm:$0xff] %v624
                  %v626 = vld [vmem:[%s450 + $0x570] sm:$0xff]
                  %627 = vst [vmem:[%s451 + $0x2b8] sm:$0xff] %v626
                  %v628 = vld [vmem:[%s450 + $0x580] sm:$0xff]
                  %629 = vst [vmem:[%s451 + $0x2c0] sm:$0xff] %v628
                  %v630 = vld [vmem:[%s450 + $0x590] sm:$0xff]
                  %631 = vst [vmem:[%s451 + $0x2c8] sm:$0xff] %v630
                  %v632 = vld [vmem:[%s450 + $0x5a0] sm:$0xff]
                  %633 = vst [vmem:[%s451 + $0x2d0] sm:$0xff] %v632
                  %v634 = vld [vmem:[%s450 + $0x5b0] sm:$0xff]
                  %635 = vst [vmem:[%s451 + $0x2d8] sm:$0xff] %v634
                  %v636 = vld [vmem:[%s450 + $0x5c0] sm:$0xff]
                  %637 = vst [vmem:[%s451 + $0x2e0] sm:$0xff] %v636
                  %v638 = vld [vmem:[%s450 + $0x5d0] sm:$0xff]
                  %639 = vst [vmem:[%s451 + $0x2e8] sm:$0xff] %v638
                  %v640 = vld [vmem:[%s450 + $0x5e0] sm:$0xff]
                  %641 = vst [vmem:[%s451 + $0x2f0] sm:$0xff] %v640
                  %v642 = vld [vmem:[%s450 + $0x5f0] sm:$0xff]
                  %643 = vst [vmem:[%s451 + $0x2f8] sm:$0xff] %v642
                  %v644 = vld [vmem:[%s450 + $0x600] sm:$0xff]
                  %645 = vst [vmem:[%s451 + $0x300] sm:$0xff] %v644
                  %v646 = vld [vmem:[%s450 + $0x610] sm:$0xff]
                  %647 = vst [vmem:[%s451 + $0x308] sm:$0xff] %v646
                  %v648 = vld [vmem:[%s450 + $0x620] sm:$0xff]
                  %649 = vst [vmem:[%s451 + $0x310] sm:$0xff] %v648
                  %v650 = vld [vmem:[%s450 + $0x630] sm:$0xff]
                  %651 = vst [vmem:[%s451 + $0x318] sm:$0xff] %v650
                  %v652 = vld [vmem:[%s450 + $0x640] sm:$0xff]
                  %653 = vst [vmem:[%s451 + $0x320] sm:$0xff] %v652
                  %v654 = vld [vmem:[%s450 + $0x650] sm:$0xff]
                  %655 = vst [vmem:[%s451 + $0x328] sm:$0xff] %v654
                  %v656 = vld [vmem:[%s450 + $0x660] sm:$0xff]
                  %657 = vst [vmem:[%s451 + $0x330] sm:$0xff] %v656
                  %v658 = vld [vmem:[%s450 + $0x670] sm:$0xff]
                  %659 = vst [vmem:[%s451 + $0x338] sm:$0xff] %v658
                  %v660 = vld [vmem:[%s450 + $0x680] sm:$0xff]
                  %661 = vst [vmem:[%s451 + $0x340] sm:$0xff] %v660
                  %v662 = vld [vmem:[%s450 + $0x690] sm:$0xff]
                  %663 = vst [vmem:[%s451 + $0x348] sm:$0xff] %v662
                  %v664 = vld [vmem:[%s450 + $0x6a0] sm:$0xff]
                  %665 = vst [vmem:[%s451 + $0x350] sm:$0xff] %v664
                  %v666 = vld [vmem:[%s450 + $0x6b0] sm:$0xff]
                  %667 = vst [vmem:[%s451 + $0x358] sm:$0xff] %v666
                  %v668 = vld [vmem:[%s450 + $0x6c0] sm:$0xff]
                  %669 = vst [vmem:[%s451 + $0x360] sm:$0xff] %v668
                  %v670 = vld [vmem:[%s450 + $0x6d0] sm:$0xff]
                  %671 = vst [vmem:[%s451 + $0x368] sm:$0xff] %v670
                  %v672 = vld [vmem:[%s450 + $0x6e0] sm:$0xff]
                  %673 = vst [vmem:[%s451 + $0x370] sm:$0xff] %v672
                  %v674 = vld [vmem:[%s450 + $0x6f0] sm:$0xff]
                  %675 = vst [vmem:[%s451 + $0x378] sm:$0xff] %v674
                  %v676 = vld [vmem:[%s450 + $0x700] sm:$0xff]
                  %677 = vst [vmem:[%s451 + $0x380] sm:$0xff] %v676
                  %v678 = vld [vmem:[%s450 + $0x710] sm:$0xff]
                  %679 = vst [vmem:[%s451 + $0x388] sm:$0xff] %v678
                  %v680 = vld [vmem:[%s450 + $0x720] sm:$0xff]
                  %681 = vst [vmem:[%s451 + $0x390] sm:$0xff] %v680
                  %v682 = vld [vmem:[%s450 + $0x730] sm:$0xff]
                  %683 = vst [vmem:[%s451 + $0x398] sm:$0xff] %v682
                  %v684 = vld [vmem:[%s450 + $0x740] sm:$0xff]
                  %685 = vst [vmem:[%s451 + $0x3a0] sm:$0xff] %v684
                  %v686 = vld [vmem:[%s450 + $0x750] sm:$0xff]
                  %687 = vst [vmem:[%s451 + $0x3a8] sm:$0xff] %v686
                  %v688 = vld [vmem:[%s450 + $0x760] sm:$0xff]
                  %689 = vst [vmem:[%s451 + $0x3b0] sm:$0xff] %v688
                  %v690 = vld [vmem:[%s450 + $0x770] sm:$0xff]
                  %691 = vst [vmem:[%s451 + $0x3b8] sm:$0xff] %v690
                  %v692 = vld [vmem:[%s450 + $0x780] sm:$0xff]
                  %693 = vst [vmem:[%s451 + $0x3c0] sm:$0xff] %v692
                  %v694 = vld [vmem:[%s450 + $0x790] sm:$0xff]
                  %695 = vst [vmem:[%s451 + $0x3c8] sm:$0xff] %v694
                  %v696 = vld [vmem:[%s450 + $0x7a0] sm:$0xff]
                  %697 = vst [vmem:[%s451 + $0x3d0] sm:$0xff] %v696
                  %v698 = vld [vmem:[%s450 + $0x7b0] sm:$0xff]
                  %699 = vst [vmem:[%s451 + $0x3d8] sm:$0xff] %v698
                  %v700 = vld [vmem:[%s450 + $0x7c0] sm:$0xff]
                  %701 = vst [vmem:[%s451 + $0x3e0] sm:$0xff] %v700
                  %v702 = vld [vmem:[%s450 + $0x7d0] sm:$0xff]
                  %703 = vst [vmem:[%s451 + $0x3e8] sm:$0xff] %v702
                  %v704 = vld [vmem:[%s450 + $0x7e0] sm:$0xff]
                  %705 = vst [vmem:[%s451 + $0x3f0] sm:$0xff] %v704
                  %v706 = vld [vmem:[%s450 + $0x7f0] sm:$0xff]
                  %707 = vst [vmem:[%s451 + $0x3f8] sm:$0xff] %v706
                $region52: #{classblock_arc_forward.1} parent=46 // loop_footer
                  %s449 = sadd.s32 1, %s445
                $region53: #{classblock_arc_forward.1} parent=46 // loop_footer_branch
                  %444 = sbr.rel target = $region49
                $region54: #{classblock_arc_forward.1} parent=46 // loop_exit
                  _
              $region47: #{classblock_arc_forward.1} parent=31 // pred_fallthru
                _
              // Predicated region
              $region55: #{classblock_arc_forward.1} parent=31 // pred_check
                _
              $region56: #{classblock_arc_forward.1} parent=31 // pred_check_branch
                %709 = sbr.rel target = $region58
              $region57: #{classblock_arc_forward.1} parent=31 // pred_region
                _
              $region58: #{classblock_arc_forward.1} parent=31 // pred_fallthru
                _
            $region32: #{classblock_arc_forward.1} parent=27 // pred_fallthru
              _
            // Predicated region
            $region33: #{classblock_arc_forward.1} parent=27 // pred_check
              _
            $region34: #{classblock_arc_forward.1} parent=27 // pred_check_branch
              %175 = sbr.rel target = $region36
            $region35: #{classblock_arc_forward.1} parent=27 // pred_region
              %s177 = ssub.s32 256, 1
              loop: start=0, step=1, limit=1
              $region37: #{classblock_arc_forward.1} parent=35 // loop_pre_header
                _
              $region38: #{classblock_arc_forward.1} parent=35 // loop_header
                %s179 = sphi 0, %s183
                %p180 = scmp.ge.s32.totalorder %s179, 1
                %s184 = sphi %s169, %s169
                %s185 = sphi %s166, %s166
              $region39: #{classblock_arc_forward.1} parent=35 // loop_header_branch
                %182 = sbr.rel (%p180) target = $region43
              $region40: #{classblock_arc_forward.1} parent=35 // loop_body
                %v186 = vld [vmem:[%s184] sm:%s177]
                %187 = vst [vmem:[%s185] sm:%s177] %v186
                %v188 = vld [vmem:[%s184 + $0x10] sm:%s177]
                %189 = vst [vmem:[%s185 + $0x8] sm:%s177] %v188
                %v190 = vld [vmem:[%s184 + $0x20] sm:%s177]
                %191 = vst [vmem:[%s185 + $0x10] sm:%s177] %v190
                %v192 = vld [vmem:[%s184 + $0x30] sm:%s177]
                %193 = vst [vmem:[%s185 + $0x18] sm:%s177] %v192
                %v194 = vld [vmem:[%s184 + $0x40] sm:%s177]
                %195 = vst [vmem:[%s185 + $0x20] sm:%s177] %v194
                %v196 = vld [vmem:[%s184 + $0x50] sm:%s177]
                %197 = vst [vmem:[%s185 + $0x28] sm:%s177] %v196
                %v198 = vld [vmem:[%s184 + $0x60] sm:%s177]
                %199 = vst [vmem:[%s185 + $0x30] sm:%s177] %v198
                %v200 = vld [vmem:[%s184 + $0x70] sm:%s177]
                %201 = vst [vmem:[%s185 + $0x38] sm:%s177] %v200
                %v202 = vld [vmem:[%s184 + $0x80] sm:%s177]
                %203 = vst [vmem:[%s185 + $0x40] sm:%s177] %v202
                %v204 = vld [vmem:[%s184 + $0x90] sm:%s177]
                %205 = vst [vmem:[%s185 + $0x48] sm:%s177] %v204
                %v206 = vld [vmem:[%s184 + $0xa0] sm:%s177]
                %207 = vst [vmem:[%s185 + $0x50] sm:%s177] %v206
                %v208 = vld [vmem:[%s184 + $0xb0] sm:%s177]
                %209 = vst [vmem:[%s185 + $0x58] sm:%s177] %v208
                %v210 = vld [vmem:[%s184 + $0xc0] sm:%s177]
                %211 = vst [vmem:[%s185 + $0x60] sm:%s177] %v210
                %v212 = vld [vmem:[%s184 + $0xd0] sm:%s177]
                %213 = vst [vmem:[%s185 + $0x68] sm:%s177] %v212
                %v214 = vld [vmem:[%s184 + $0xe0] sm:%s177]
                %215 = vst [vmem:[%s185 + $0x70] sm:%s177] %v214
                %v216 = vld [vmem:[%s184 + $0xf0] sm:%s177]
                %217 = vst [vmem:[%s185 + $0x78] sm:%s177] %v216
                %v218 = vld [vmem:[%s184 + $0x100] sm:%s177]
                %219 = vst [vmem:[%s185 + $0x80] sm:%s177] %v218
                %v220 = vld [vmem:[%s184 + $0x110] sm:%s177]
                %221 = vst [vmem:[%s185 + $0x88] sm:%s177] %v220
                %v222 = vld [vmem:[%s184 + $0x120] sm:%s177]
                %223 = vst [vmem:[%s185 + $0x90] sm:%s177] %v222
                %v224 = vld [vmem:[%s184 + $0x130] sm:%s177]
                %225 = vst [vmem:[%s185 + $0x98] sm:%s177] %v224
                %v226 = vld [vmem:[%s184 + $0x140] sm:%s177]
                %227 = vst [vmem:[%s185 + $0xa0] sm:%s177] %v226
                %v228 = vld [vmem:[%s184 + $0x150] sm:%s177]
                %229 = vst [vmem:[%s185 + $0xa8] sm:%s177] %v228
                %v230 = vld [vmem:[%s184 + $0x160] sm:%s177]
                %231 = vst [vmem:[%s185 + $0xb0] sm:%s177] %v230
                %v232 = vld [vmem:[%s184 + $0x170] sm:%s177]
                %233 = vst [vmem:[%s185 + $0xb8] sm:%s177] %v232
                %v234 = vld [vmem:[%s184 + $0x180] sm:%s177]
                %235 = vst [vmem:[%s185 + $0xc0] sm:%s177] %v234
                %v236 = vld [vmem:[%s184 + $0x190] sm:%s177]
                %237 = vst [vmem:[%s185 + $0xc8] sm:%s177] %v236
                %v238 = vld [vmem:[%s184 + $0x1a0] sm:%s177]
                %239 = vst [vmem:[%s185 + $0xd0] sm:%s177] %v238
                %v240 = vld [vmem:[%s184 + $0x1b0] sm:%s177]
                %241 = vst [vmem:[%s185 + $0xd8] sm:%s177] %v240
                %v242 = vld [vmem:[%s184 + $0x1c0] sm:%s177]
                %243 = vst [vmem:[%s185 + $0xe0] sm:%s177] %v242
                %v244 = vld [vmem:[%s184 + $0x1d0] sm:%s177]
                %245 = vst [vmem:[%s185 + $0xe8] sm:%s177] %v244
                %v246 = vld [vmem:[%s184 + $0x1e0] sm:%s177]
                %247 = vst [vmem:[%s185 + $0xf0] sm:%s177] %v246
                %v248 = vld [vmem:[%s184 + $0x1f0] sm:%s177]
                %249 = vst [vmem:[%s185 + $0xf8] sm:%s177] %v248
                %v250 = vld [vmem:[%s184 + $0x200] sm:%s177]
                %251 = vst [vmem:[%s185 + $0x100] sm:%s177] %v250
                %v252 = vld [vmem:[%s184 + $0x210] sm:%s177]
                %253 = vst [vmem:[%s185 + $0x108] sm:%s177] %v252
                %v254 = vld [vmem:[%s184 + $0x220] sm:%s177]
                %255 = vst [vmem:[%s185 + $0x110] sm:%s177] %v254
                %v256 = vld [vmem:[%s184 + $0x230] sm:%s177]
                %257 = vst [vmem:[%s185 + $0x118] sm:%s177] %v256
                %v258 = vld [vmem:[%s184 + $0x240] sm:%s177]
                %259 = vst [vmem:[%s185 + $0x120] sm:%s177] %v258
                %v260 = vld [vmem:[%s184 + $0x250] sm:%s177]
                %261 = vst [vmem:[%s185 + $0x128] sm:%s177] %v260
                %v262 = vld [vmem:[%s184 + $0x260] sm:%s177]
                %263 = vst [vmem:[%s185 + $0x130] sm:%s177] %v262
                %v264 = vld [vmem:[%s184 + $0x270] sm:%s177]
                %265 = vst [vmem:[%s185 + $0x138] sm:%s177] %v264
                %v266 = vld [vmem:[%s184 + $0x280] sm:%s177]
                %267 = vst [vmem:[%s185 + $0x140] sm:%s177] %v266
                %v268 = vld [vmem:[%s184 + $0x290] sm:%s177]
                %269 = vst [vmem:[%s185 + $0x148] sm:%s177] %v268
                %v270 = vld [vmem:[%s184 + $0x2a0] sm:%s177]
                %271 = vst [vmem:[%s185 + $0x150] sm:%s177] %v270
                %v272 = vld [vmem:[%s184 + $0x2b0] sm:%s177]
                %273 = vst [vmem:[%s185 + $0x158] sm:%s177] %v272
                %v274 = vld [vmem:[%s184 + $0x2c0] sm:%s177]
                %275 = vst [vmem:[%s185 + $0x160] sm:%s177] %v274
                %v276 = vld [vmem:[%s184 + $0x2d0] sm:%s177]
                %277 = vst [vmem:[%s185 + $0x168] sm:%s177] %v276
                %v278 = vld [vmem:[%s184 + $0x2e0] sm:%s177]
                %279 = vst [vmem:[%s185 + $0x170] sm:%s177] %v278
                %v280 = vld [vmem:[%s184 + $0x2f0] sm:%s177]
                %281 = vst [vmem:[%s185 + $0x178] sm:%s177] %v280
                %v282 = vld [vmem:[%s184 + $0x300] sm:%s177]
                %283 = vst [vmem:[%s185 + $0x180] sm:%s177] %v282
                %v284 = vld [vmem:[%s184 + $0x310] sm:%s177]
                %285 = vst [vmem:[%s185 + $0x188] sm:%s177] %v284
                %v286 = vld [vmem:[%s184 + $0x320] sm:%s177]
                %287 = vst [vmem:[%s185 + $0x190] sm:%s177] %v286
                %v288 = vld [vmem:[%s184 + $0x330] sm:%s177]
                %289 = vst [vmem:[%s185 + $0x198] sm:%s177] %v288
                %v290 = vld [vmem:[%s184 + $0x340] sm:%s177]
                %291 = vst [vmem:[%s185 + $0x1a0] sm:%s177] %v290
                %v292 = vld [vmem:[%s184 + $0x350] sm:%s177]
                %293 = vst [vmem:[%s185 + $0x1a8] sm:%s177] %v292
                %v294 = vld [vmem:[%s184 + $0x360] sm:%s177]
                %295 = vst [vmem:[%s185 + $0x1b0] sm:%s177] %v294
                %v296 = vld [vmem:[%s184 + $0x370] sm:%s177]
                %297 = vst [vmem:[%s185 + $0x1b8] sm:%s177] %v296
                %v298 = vld [vmem:[%s184 + $0x380] sm:%s177]
                %299 = vst [vmem:[%s185 + $0x1c0] sm:%s177] %v298
                %v300 = vld [vmem:[%s184 + $0x390] sm:%s177]
                %301 = vst [vmem:[%s185 + $0x1c8] sm:%s177] %v300
                %v302 = vld [vmem:[%s184 + $0x3a0] sm:%s177]
                %303 = vst [vmem:[%s185 + $0x1d0] sm:%s177] %v302
                %v304 = vld [vmem:[%s184 + $0x3b0] sm:%s177]
                %305 = vst [vmem:[%s185 + $0x1d8] sm:%s177] %v304
                %v306 = vld [vmem:[%s184 + $0x3c0] sm:%s177]
                %307 = vst [vmem:[%s185 + $0x1e0] sm:%s177] %v306
                %v308 = vld [vmem:[%s184 + $0x3d0] sm:%s177]
                %309 = vst [vmem:[%s185 + $0x1e8] sm:%s177] %v308
                %v310 = vld [vmem:[%s184 + $0x3e0] sm:%s177]
                %311 = vst [vmem:[%s185 + $0x1f0] sm:%s177] %v310
                %v312 = vld [vmem:[%s184 + $0x3f0] sm:%s177]
                %313 = vst [vmem:[%s185 + $0x1f8] sm:%s177] %v312
                %v314 = vld [vmem:[%s184 + $0x400] sm:%s177]
                %315 = vst [vmem:[%s185 + $0x200] sm:%s177] %v314
                %v316 = vld [vmem:[%s184 + $0x410] sm:%s177]
                %317 = vst [vmem:[%s185 + $0x208] sm:%s177] %v316
                %v318 = vld [vmem:[%s184 + $0x420] sm:%s177]
                %319 = vst [vmem:[%s185 + $0x210] sm:%s177] %v318
                %v320 = vld [vmem:[%s184 + $0x430] sm:%s177]
                %321 = vst [vmem:[%s185 + $0x218] sm:%s177] %v320
                %v322 = vld [vmem:[%s184 + $0x440] sm:%s177]
                %323 = vst [vmem:[%s185 + $0x220] sm:%s177] %v322
                %v324 = vld [vmem:[%s184 + $0x450] sm:%s177]
                %325 = vst [vmem:[%s185 + $0x228] sm:%s177] %v324
                %v326 = vld [vmem:[%s184 + $0x460] sm:%s177]
                %327 = vst [vmem:[%s185 + $0x230] sm:%s177] %v326
                %v328 = vld [vmem:[%s184 + $0x470] sm:%s177]
                %329 = vst [vmem:[%s185 + $0x238] sm:%s177] %v328
                %v330 = vld [vmem:[%s184 + $0x480] sm:%s177]
                %331 = vst [vmem:[%s185 + $0x240] sm:%s177] %v330
                %v332 = vld [vmem:[%s184 + $0x490] sm:%s177]
                %333 = vst [vmem:[%s185 + $0x248] sm:%s177] %v332
                %v334 = vld [vmem:[%s184 + $0x4a0] sm:%s177]
                %335 = vst [vmem:[%s185 + $0x250] sm:%s177] %v334
                %v336 = vld [vmem:[%s184 + $0x4b0] sm:%s177]
                %337 = vst [vmem:[%s185 + $0x258] sm:%s177] %v336
                %v338 = vld [vmem:[%s184 + $0x4c0] sm:%s177]
                %339 = vst [vmem:[%s185 + $0x260] sm:%s177] %v338
                %v340 = vld [vmem:[%s184 + $0x4d0] sm:%s177]
                %341 = vst [vmem:[%s185 + $0x268] sm:%s177] %v340
                %v342 = vld [vmem:[%s184 + $0x4e0] sm:%s177]
                %343 = vst [vmem:[%s185 + $0x270] sm:%s177] %v342
                %v344 = vld [vmem:[%s184 + $0x4f0] sm:%s177]
                %345 = vst [vmem:[%s185 + $0x278] sm:%s177] %v344
                %v346 = vld [vmem:[%s184 + $0x500] sm:%s177]
                %347 = vst [vmem:[%s185 + $0x280] sm:%s177] %v346
                %v348 = vld [vmem:[%s184 + $0x510] sm:%s177]
                %349 = vst [vmem:[%s185 + $0x288] sm:%s177] %v348
                %v350 = vld [vmem:[%s184 + $0x520] sm:%s177]
                %351 = vst [vmem:[%s185 + $0x290] sm:%s177] %v350
                %v352 = vld [vmem:[%s184 + $0x530] sm:%s177]
                %353 = vst [vmem:[%s185 + $0x298] sm:%s177] %v352
                %v354 = vld [vmem:[%s184 + $0x540] sm:%s177]
                %355 = vst [vmem:[%s185 + $0x2a0] sm:%s177] %v354
                %v356 = vld [vmem:[%s184 + $0x550] sm:%s177]
                %357 = vst [vmem:[%s185 + $0x2a8] sm:%s177] %v356
                %v358 = vld [vmem:[%s184 + $0x560] sm:%s177]
                %359 = vst [vmem:[%s185 + $0x2b0] sm:%s177] %v358
                %v360 = vld [vmem:[%s184 + $0x570] sm:%s177]
                %361 = vst [vmem:[%s185 + $0x2b8] sm:%s177] %v360
                %v362 = vld [vmem:[%s184 + $0x580] sm:%s177]
                %363 = vst [vmem:[%s185 + $0x2c0] sm:%s177] %v362
                %v364 = vld [vmem:[%s184 + $0x590] sm:%s177]
                %365 = vst [vmem:[%s185 + $0x2c8] sm:%s177] %v364
                %v366 = vld [vmem:[%s184 + $0x5a0] sm:%s177]
                %367 = vst [vmem:[%s185 + $0x2d0] sm:%s177] %v366
                %v368 = vld [vmem:[%s184 + $0x5b0] sm:%s177]
                %369 = vst [vmem:[%s185 + $0x2d8] sm:%s177] %v368
                %v370 = vld [vmem:[%s184 + $0x5c0] sm:%s177]
                %371 = vst [vmem:[%s185 + $0x2e0] sm:%s177] %v370
                %v372 = vld [vmem:[%s184 + $0x5d0] sm:%s177]
                %373 = vst [vmem:[%s185 + $0x2e8] sm:%s177] %v372
                %v374 = vld [vmem:[%s184 + $0x5e0] sm:%s177]
                %375 = vst [vmem:[%s185 + $0x2f0] sm:%s177] %v374
                %v376 = vld [vmem:[%s184 + $0x5f0] sm:%s177]
                %377 = vst [vmem:[%s185 + $0x2f8] sm:%s177] %v376
                %v378 = vld [vmem:[%s184 + $0x600] sm:%s177]
                %379 = vst [vmem:[%s185 + $0x300] sm:%s177] %v378
                %v380 = vld [vmem:[%s184 + $0x610] sm:%s177]
                %381 = vst [vmem:[%s185 + $0x308] sm:%s177] %v380
                %v382 = vld [vmem:[%s184 + $0x620] sm:%s177]
                %383 = vst [vmem:[%s185 + $0x310] sm:%s177] %v382
                %v384 = vld [vmem:[%s184 + $0x630] sm:%s177]
                %385 = vst [vmem:[%s185 + $0x318] sm:%s177] %v384
                %v386 = vld [vmem:[%s184 + $0x640] sm:%s177]
                %387 = vst [vmem:[%s185 + $0x320] sm:%s177] %v386
                %v388 = vld [vmem:[%s184 + $0x650] sm:%s177]
                %389 = vst [vmem:[%s185 + $0x328] sm:%s177] %v388
                %v390 = vld [vmem:[%s184 + $0x660] sm:%s177]
                %391 = vst [vmem:[%s185 + $0x330] sm:%s177] %v390
                %v392 = vld [vmem:[%s184 + $0x670] sm:%s177]
                %393 = vst [vmem:[%s185 + $0x338] sm:%s177] %v392
                %v394 = vld [vmem:[%s184 + $0x680] sm:%s177]
                %395 = vst [vmem:[%s185 + $0x340] sm:%s177] %v394
                %v396 = vld [vmem:[%s184 + $0x690] sm:%s177]
                %397 = vst [vmem:[%s185 + $0x348] sm:%s177] %v396
                %v398 = vld [vmem:[%s184 + $0x6a0] sm:%s177]
                %399 = vst [vmem:[%s185 + $0x350] sm:%s177] %v398
                %v400 = vld [vmem:[%s184 + $0x6b0] sm:%s177]
                %401 = vst [vmem:[%s185 + $0x358] sm:%s177] %v400
                %v402 = vld [vmem:[%s184 + $0x6c0] sm:%s177]
                %403 = vst [vmem:[%s185 + $0x360] sm:%s177] %v402
                %v404 = vld [vmem:[%s184 + $0x6d0] sm:%s177]
                %405 = vst [vmem:[%s185 + $0x368] sm:%s177] %v404
                %v406 = vld [vmem:[%s184 + $0x6e0] sm:%s177]
                %407 = vst [vmem:[%s185 + $0x370] sm:%s177] %v406
                %v408 = vld [vmem:[%s184 + $0x6f0] sm:%s177]
                %409 = vst [vmem:[%s185 + $0x378] sm:%s177] %v408
                %v410 = vld [vmem:[%s184 + $0x700] sm:%s177]
                %411 = vst [vmem:[%s185 + $0x380] sm:%s177] %v410
                %v412 = vld [vmem:[%s184 + $0x710] sm:%s177]
                %413 = vst [vmem:[%s185 + $0x388] sm:%s177] %v412
                %v414 = vld [vmem:[%s184 + $0x720] sm:%s177]
                %415 = vst [vmem:[%s185 + $0x390] sm:%s177] %v414
                %v416 = vld [vmem:[%s184 + $0x730] sm:%s177]
                %417 = vst [vmem:[%s185 + $0x398] sm:%s177] %v416
                %v418 = vld [vmem:[%s184 + $0x740] sm:%s177]
                %419 = vst [vmem:[%s185 + $0x3a0] sm:%s177] %v418
                %v420 = vld [vmem:[%s184 + $0x750] sm:%s177]
                %421 = vst [vmem:[%s185 + $0x3a8] sm:%s177] %v420
                %v422 = vld [vmem:[%s184 + $0x760] sm:%s177]
                %423 = vst [vmem:[%s185 + $0x3b0] sm:%s177] %v422
                %v424 = vld [vmem:[%s184 + $0x770] sm:%s177]
                %425 = vst [vmem:[%s185 + $0x3b8] sm:%s177] %v424
                %v426 = vld [vmem:[%s184 + $0x780] sm:%s177]
                %427 = vst [vmem:[%s185 + $0x3c0] sm:%s177] %v426
                %v428 = vld [vmem:[%s184 + $0x790] sm:%s177]
                %429 = vst [vmem:[%s185 + $0x3c8] sm:%s177] %v428
                %v430 = vld [vmem:[%s184 + $0x7a0] sm:%s177]
                %431 = vst [vmem:[%s185 + $0x3d0] sm:%s177] %v430
                %v432 = vld [vmem:[%s184 + $0x7b0] sm:%s177]
                %433 = vst [vmem:[%s185 + $0x3d8] sm:%s177] %v432
                %v434 = vld [vmem:[%s184 + $0x7c0] sm:%s177]
                %435 = vst [vmem:[%s185 + $0x3e0] sm:%s177] %v434
                %v436 = vld [vmem:[%s184 + $0x7d0] sm:%s177]
                %437 = vst [vmem:[%s185 + $0x3e8] sm:%s177] %v436
                %v438 = vld [vmem:[%s184 + $0x7e0] sm:%s177]
                %439 = vst [vmem:[%s185 + $0x3f0] sm:%s177] %v438
                %v440 = vld [vmem:[%s184 + $0x7f0] sm:%s177]
                %441 = vst [vmem:[%s185 + $0x3f8] sm:%s177] %v440
              $region41: #{classblock_arc_forward.1} parent=35 // loop_footer
                %s183 = sadd.s32 1, %s179
              $region42: #{classblock_arc_forward.1} parent=35 // loop_footer_branch
                %178 = sbr.rel target = $region38
              $region43: #{classblock_arc_forward.1} parent=35 // loop_exit
                _
            $region36: #{classblock_arc_forward.1} parent=27 // pred_fallthru
              _
          $region28: #{classblock_arc_forward.1} parent=23 // pred_fallthru
            _
          %710 = vnop
        $region24: #{classblock_arc_forward.1} parent=19 // pred_fallthru
          _
        // Predicated region
        $region59: #{classblock_arc_forward.1} parent=19 // pred_check
          %p711 = pneg %p80
        $region60: #{classblock_arc_forward.1} parent=19 // pred_check_branch
          %713 = sbr.rel (%p711) target = $region62
        $region61: #{classblock_arc_forward.1} parent=19 // pred_region
          %s714 = smul.u32 2, %s13
          %p715 = scmp.lt.s32.totalorder %s714, 3
          %s716 = scalar_select %p715, %s714, 3
          %s717 = scalar_lea.vmem %s2, %s716
          %s718 = smul.u32 2, %s13
        $region62: #{classblock_arc_forward.1} parent=19 // pred_fallthru
          _
        // Predicated region
        $region63: #{classblock_arc_forward.1} parent=19 // pred_check
          %p719 = pneg %p106
        $region64: #{classblock_arc_forward.1} parent=19 // pred_check_branch
          %721 = sbr.rel (%p719) target = $region66
        $region65: #{classblock_arc_forward.1} parent=19 // pred_region
          %s722 = smul.u32 2, %s13
          %p723 = scmp.lt.s32.totalorder %s722, 3
          %s724 = scalar_select %p723, %s722, 3
          %s725 = scalar_lea.vmem %s3, %s724
          %s726 = smul.u32 2, %s13
        $region66: #{classblock_arc_forward.1} parent=19 // pred_fallthru
          _
      $region20: #{classblock_arc_forward.1} parent=5 // pred_fallthru
        _
      %p727 = scmp.le.s32.totalorder 1, %s13
      %p728 = scmp.lt.s32.totalorder %s13, 3
      %p729 = pnand %p727, %p728
      %p730 = pneg %p729
      // Predicated region
      $region67: #{classblock_arc_forward.1} parent=5 // pred_check
        _
      $region68: #{classblock_arc_forward.1} parent=5 // pred_check_branch
        %732 = sbr.rel (%p729) target = $region70
      $region69: #{classblock_arc_forward.1} parent=5 // pred_region
        %s733 = ssub.s32 %s13, 1
        %s734 = sand.u32 %s47, 1
        %s735 = sand.u32 %s47, 1
        %s736 = smul.addr %s735, 1024
        %s737 = scalar_lea.vmem [#allocation2], %s736
        // Predicated region
        $region71: #{classblock_arc_forward.1} parent=69 // pred_check
          %p738 = pneg %p60
        $region72: #{classblock_arc_forward.1} parent=69 // pred_check_branch
          %740 = sbr.rel (%p738) target = $region74
        $region73: #{classblock_arc_forward.1} parent=69 // pred_region
          _
        $region74: #{classblock_arc_forward.1} parent=69 // pred_fallthru
          _
        %p741 = pneg %p34
        %p742 = pneg %p31
        %s743 = sand.u32 %s47, 1
        %s744 = sand.u32 %s47, 1
        %s745 = smul.addr %s744, 1024
        %s746 = scalar_lea.vmem [#allocation2], %s745
        %p747 = pneg %p60
        %p748 = pneg %p57
        %s749 = smul.u32 2, %s18
        %p750 = scmp.lt.s32.totalorder %s749, 3
        %s751 = scalar_select %p750, %s749, 3
        %s752 = scalar_lea.vmem %s2, %s751
        %p753 = pneg %p86
        %p754 = pneg %p83
        %s755 = smul.u32 2, %s18
        %p756 = scmp.lt.s32.totalorder %s755, 3
        %s757 = scalar_select %p756, %s755, 3
        %s758 = scalar_lea.vmem %s3, %s757
        %p759 = pneg %p112
        %p760 = pneg %p109
        %p761 = pneg %p138
        %p762 = pneg %p135
        %s763 = sand.u32 %s125, 1
        %s764 = scalar_lea.sflag [#allocation4], %s763
        %s765 = sand.u32 %s125, 1
        %s766 = smul.addr %s765, 16
        %s767 = scalar_lea.vmem [#allocation3], %s766
        %s768 = smul.u32 2, %s18
        %s769 = smul.u32 2, %s18
        %p770 = scmp.lt.s32.totalorder %s769, 3
        %s771 = scalar_select %p770, %s769, 3
        %s772 = scalar_lea.vmem %s2, %s771
        %s773 = smul.u32 2, %s18
        %s774 = smul.u32 2, %s18
        %p775 = scmp.lt.s32.totalorder %s774, 3
        %s776 = scalar_select %p775, %s774, 3
        %s777 = scalar_lea.vmem %s3, %s776
        %s778 = smul.u32 2, %s18
        %s779 = smul.u32 2, %s18
        %v780 = vld [vmem:[%s0] sm:$0xff]
        %v781 = vld [vmem:[%s0 + $0x8] sm:$0xff]
        %v782 = vld [vmem:[%s0 + $0x10] sm:$0xff]
        %v783 = vld [vmem:[%s0 + $0x18] sm:$0xff]
        %v784 = vld [vmem:[%s737] sm:$0xff]
        %v785 = vld [vmem:[%s737 + $0x8] sm:$0xff]
        %v786 = vld [vmem:[%s737 + $0x10] sm:$0xff]
        %v787 = vld [vmem:[%s737 + $0x18] sm:$0xff]
        %v788 = vld [vmem:[%s737 + $0x20] sm:$0xff]
        %v789 = vld [vmem:[%s737 + $0x28] sm:$0xff]
        %v790 = vld [vmem:[%s737 + $0x30] sm:$0xff]
        %v791 = vld [vmem:[%s737 + $0x38] sm:$0xff]
        %v792 = vld [vmem:[%s737 + $0x40] sm:$0xff]
        %v793 = vld [vmem:[%s737 + $0x48] sm:$0xff]
        %v794 = vld [vmem:[%s737 + $0x50] sm:$0xff]
        %v795 = vld [vmem:[%s737 + $0x58] sm:$0xff]
        %v796 = vld [vmem:[%s737 + $0x60] sm:$0xff]
        %v797 = vld [vmem:[%s737 + $0x68] sm:$0xff]
        %v798 = vld [vmem:[%s737 + $0x70] sm:$0xff]
        %v799 = vld [vmem:[%s737 + $0x78] sm:$0xff]
        %v800 = vld [vmem:[%s737 + $0x80] sm:$0xff]
        %v801 = vld [vmem:[%s737 + $0x88] sm:$0xff]
        %v802 = vld [vmem:[%s737 + $0x90] sm:$0xff]
        %v803 = vld [vmem:[%s737 + $0x98] sm:$0xff]
        %v804 = vld [vmem:[%s737 + $0xa0] sm:$0xff]
        %v805 = vld [vmem:[%s737 + $0xa8] sm:$0xff]
        %v806 = vld [vmem:[%s737 + $0xb0] sm:$0xff]
        %v807 = vld [vmem:[%s737 + $0xb8] sm:$0xff]
        %v808 = vld [vmem:[%s737 + $0xc0] sm:$0xff]
        %v809 = vld [vmem:[%s737 + $0xc8] sm:$0xff]
        %v810 = vld [vmem:[%s737 + $0xd0] sm:$0xff]
        %v811 = vld [vmem:[%s737 + $0xd8] sm:$0xff]
        %v812 = vld [vmem:[%s737 + $0xe0] sm:$0xff]
        %v813 = vld [vmem:[%s737 + $0xe8] sm:$0xff]
        %v814 = vld [vmem:[%s737 + $0xf0] sm:$0xff]
        %v815 = vld [vmem:[%s737 + $0xf8] sm:$0xff]
        %v816 = vld [vmem:[%s737 + $0x100] sm:$0xff]
        %v817 = vld [vmem:[%s737 + $0x108] sm:$0xff]
        %v818 = vld [vmem:[%s737 + $0x110] sm:$0xff]
        %v819 = vld [vmem:[%s737 + $0x118] sm:$0xff]
        %v820 = vld [vmem:[%s737 + $0x120] sm:$0xff]
        %v821 = vld [vmem:[%s737 + $0x128] sm:$0xff]
        %v822 = vld [vmem:[%s737 + $0x130] sm:$0xff]
        %v823 = vld [vmem:[%s737 + $0x138] sm:$0xff]
        %v824 = vld [vmem:[%s737 + $0x140] sm:$0xff]
        %v825 = vld [vmem:[%s737 + $0x148] sm:$0xff]
        %v826 = vld [vmem:[%s737 + $0x150] sm:$0xff]
        %v827 = vld [vmem:[%s737 + $0x158] sm:$0xff]
        %v828 = vld [vmem:[%s737 + $0x160] sm:$0xff]
        %v829 = vld [vmem:[%s737 + $0x168] sm:$0xff]
        %v830 = vld [vmem:[%s737 + $0x170] sm:$0xff]
        %v831 = vld [vmem:[%s737 + $0x178] sm:$0xff]
        %v832 = vld [vmem:[%s737 + $0x180] sm:$0xff]
        %v833 = vld [vmem:[%s737 + $0x188] sm:$0xff]
        %v834 = vld [vmem:[%s737 + $0x190] sm:$0xff]
        %v835 = vld [vmem:[%s737 + $0x198] sm:$0xff]
        %v836 = vld [vmem:[%s737 + $0x1a0] sm:$0xff]
        %v837 = vld [vmem:[%s737 + $0x1a8] sm:$0xff]
        %v838 = vld [vmem:[%s737 + $0x1b0] sm:$0xff]
        %v839 = vld [vmem:[%s737 + $0x1b8] sm:$0xff]
        %v840 = vld [vmem:[%s737 + $0x1c0] sm:$0xff]
        %v841 = vld [vmem:[%s737 + $0x1c8] sm:$0xff]
        %v842 = vld [vmem:[%s737 + $0x1d0] sm:$0xff]
        %v843 = vld [vmem:[%s737 + $0x1d8] sm:$0xff]
        %v844 = vld [vmem:[%s737 + $0x1e0] sm:$0xff]
        %v845 = vld [vmem:[%s737 + $0x1e8] sm:$0xff]
        %v846 = vld [vmem:[%s737 + $0x1f0] sm:$0xff]
        %v847 = vld [vmem:[%s737 + $0x1f8] sm:$0xff]
        %v848 = vld [vmem:[%s737 + $0x200] sm:$0xff]
        %v849 = vld [vmem:[%s737 + $0x208] sm:$0xff]
        %v850 = vld [vmem:[%s737 + $0x210] sm:$0xff]
        %v851 = vld [vmem:[%s737 + $0x218] sm:$0xff]
        %v852 = vld [vmem:[%s737 + $0x220] sm:$0xff]
        %v853 = vld [vmem:[%s737 + $0x228] sm:$0xff]
        %v854 = vld [vmem:[%s737 + $0x230] sm:$0xff]
        %v855 = vld [vmem:[%s737 + $0x238] sm:$0xff]
        %v856 = vld [vmem:[%s737 + $0x240] sm:$0xff]
        %v857 = vld [vmem:[%s737 + $0x248] sm:$0xff]
        %v858 = vld [vmem:[%s737 + $0x250] sm:$0xff]
        %v859 = vld [vmem:[%s737 + $0x258] sm:$0xff]
        %v860 = vld [vmem:[%s737 + $0x260] sm:$0xff]
        %v861 = vld [vmem:[%s737 + $0x268] sm:$0xff]
        %v862 = vld [vmem:[%s737 + $0x270] sm:$0xff]
        %v863 = vld [vmem:[%s737 + $0x278] sm:$0xff]
        %v864 = vld [vmem:[%s737 + $0x280] sm:$0xff]
        %v865 = vld [vmem:[%s737 + $0x288] sm:$0xff]
        %v866 = vld [vmem:[%s737 + $0x290] sm:$0xff]
        %v867 = vld [vmem:[%s737 + $0x298] sm:$0xff]
        %v868 = vld [vmem:[%s737 + $0x2a0] sm:$0xff]
        %v869 = vld [vmem:[%s737 + $0x2a8] sm:$0xff]
        %v870 = vld [vmem:[%s737 + $0x2b0] sm:$0xff]
        %v871 = vld [vmem:[%s737 + $0x2b8] sm:$0xff]
        %v872 = vld [vmem:[%s737 + $0x2c0] sm:$0xff]
        %v873 = vld [vmem:[%s737 + $0x2c8] sm:$0xff]
        %v874 = vld [vmem:[%s737 + $0x2d0] sm:$0xff]
        %v875 = vld [vmem:[%s737 + $0x2d8] sm:$0xff]
        %v876 = vld [vmem:[%s737 + $0x2e0] sm:$0xff]
        %v877 = vld [vmem:[%s737 + $0x2e8] sm:$0xff]
        %v878 = vld [vmem:[%s737 + $0x2f0] sm:$0xff]
        %v879 = vld [vmem:[%s737 + $0x2f8] sm:$0xff]
        %v880 = vld [vmem:[%s737 + $0x300] sm:$0xff]
        %v881 = vld [vmem:[%s737 + $0x308] sm:$0xff]
        %v882 = vld [vmem:[%s737 + $0x310] sm:$0xff]
        %v883 = vld [vmem:[%s737 + $0x318] sm:$0xff]
        %v884 = vld [vmem:[%s737 + $0x320] sm:$0xff]
        %v885 = vld [vmem:[%s737 + $0x328] sm:$0xff]
        %v886 = vld [vmem:[%s737 + $0x330] sm:$0xff]
        %v887 = vld [vmem:[%s737 + $0x338] sm:$0xff]
        %v888 = vld [vmem:[%s737 + $0x340] sm:$0xff]
        %v889 = vld [vmem:[%s737 + $0x348] sm:$0xff]
        %v890 = vld [vmem:[%s737 + $0x350] sm:$0xff]
        %v891 = vld [vmem:[%s737 + $0x358] sm:$0xff]
        %v892 = vld [vmem:[%s737 + $0x360] sm:$0xff]
        %v893 = vld [vmem:[%s737 + $0x368] sm:$0xff]
        %v894 = vld [vmem:[%s737 + $0x370] sm:$0xff]
        %v895 = vld [vmem:[%s737 + $0x378] sm:$0xff]
        %v896 = vld [vmem:[%s737 + $0x380] sm:$0xff]
        %v897 = vld [vmem:[%s737 + $0x388] sm:$0xff]
        %v898 = vld [vmem:[%s737 + $0x390] sm:$0xff]
        %v899 = vld [vmem:[%s737 + $0x398] sm:$0xff]
        %v900 = vld [vmem:[%s737 + $0x3a0] sm:$0xff]
        %v901 = vld [vmem:[%s737 + $0x3a8] sm:$0xff]
        %v902 = vld [vmem:[%s737 + $0x3b0] sm:$0xff]
        %v903 = vld [vmem:[%s737 + $0x3b8] sm:$0xff]
        %v904 = vld [vmem:[%s737 + $0x3c0] sm:$0xff]
        %v905 = vld [vmem:[%s737 + $0x3c8] sm:$0xff]
        %v906 = vld [vmem:[%s737 + $0x3d0] sm:$0xff]
        %v907 = vld [vmem:[%s737 + $0x3d8] sm:$0xff]
        %v908 = vld [vmem:[%s737 + $0x3e0] sm:$0xff]
        %v909 = vld [vmem:[%s737 + $0x3e8] sm:$0xff]
        %v910 = vld [vmem:[%s737 + $0x3f0] sm:$0xff]
        %v911 = vld [vmem:[%s737 + $0x3f8] sm:$0xff]
        %v916 = vunpack.c.l.b16 %v780
        %v917 = vunpack.c.h.b16 %v780
        %v918 = vunpack.c.l.b16 %v781
        %v919 = vunpack.c.h.b16 %v781
        %v920 = vunpack.c.l.b16 %v782
        %v921 = vunpack.c.h.b16 %v782
        %v922 = vunpack.c.l.b16 %v783
        %v923 = vunpack.c.h.b16 %v783
        %v924 = vpack.c.b16 %v916, %v916
        %v925 = vpack.c.b16 %v917, %v917
        %v926 = vpack.c.b16 %v918, %v918
        %v927 = vpack.c.b16 %v919, %v919
        %v928 = vpack.c.b16 %v920, %v920
        %v929 = vpack.c.b16 %v921, %v921
        %v930 = vpack.c.b16 %v922, %v922
        %v931 = vpack.c.b16 %v923, %v923
        %v1068 = vunpack.c.l.b16 %v784
        %v1069 = vunpack.c.h.b16 %v784
        %v1070 = vunpack.c.l.b16 %v785
        %v1071 = vunpack.c.h.b16 %v785
        %v1072 = vunpack.c.l.b16 %v786
        %v1073 = vunpack.c.h.b16 %v786
        %v1074 = vunpack.c.l.b16 %v787
        %v1075 = vunpack.c.h.b16 %v787
        %v1076 = vunpack.c.l.b16 %v788
        %v1077 = vunpack.c.h.b16 %v788
        %v1078 = vunpack.c.l.b16 %v789
        %v1079 = vunpack.c.h.b16 %v789
        %v1080 = vunpack.c.l.b16 %v790
        %v1081 = vunpack.c.h.b16 %v790
        %v1082 = vunpack.c.l.b16 %v791
        %v1083 = vunpack.c.h.b16 %v791
        %v1084 = vunpack.c.l.b16 %v792
        %v1085 = vunpack.c.h.b16 %v792
        %v1086 = vunpack.c.l.b16 %v793
        %v1087 = vunpack.c.h.b16 %v793
        %v1088 = vunpack.c.l.b16 %v794
        %v1089 = vunpack.c.h.b16 %v794
        %v1090 = vunpack.c.l.b16 %v795
        %v1091 = vunpack.c.h.b16 %v795
        %v1092 = vunpack.c.l.b16 %v796
        %v1093 = vunpack.c.h.b16 %v796
        %v1094 = vunpack.c.l.b16 %v797
        %v1095 = vunpack.c.h.b16 %v797
        %v1096 = vunpack.c.l.b16 %v798
        %v1097 = vunpack.c.h.b16 %v798
        %v1098 = vunpack.c.l.b16 %v799
        %v1099 = vunpack.c.h.b16 %v799
        %v1100 = vunpack.c.l.b16 %v800
        %v1101 = vunpack.c.h.b16 %v800
        %v1102 = vunpack.c.l.b16 %v801
        %v1103 = vunpack.c.h.b16 %v801
        %v1104 = vunpack.c.l.b16 %v802
        %v1105 = vunpack.c.h.b16 %v802
        %v1106 = vunpack.c.l.b16 %v803
        %v1107 = vunpack.c.h.b16 %v803
        %v1108 = vunpack.c.l.b16 %v804
        %v1109 = vunpack.c.h.b16 %v804
        %v1110 = vunpack.c.l.b16 %v805
        %v1111 = vunpack.c.h.b16 %v805
        %v1112 = vunpack.c.l.b16 %v806
        %v1113 = vunpack.c.h.b16 %v806
        %v1114 = vunpack.c.l.b16 %v807
        %v1115 = vunpack.c.h.b16 %v807
        %v1116 = vunpack.c.l.b16 %v808
        %v1117 = vunpack.c.h.b16 %v808
        %v1118 = vunpack.c.l.b16 %v809
        %v1119 = vunpack.c.h.b16 %v809
        %v1120 = vunpack.c.l.b16 %v810
        %v1121 = vunpack.c.h.b16 %v810
        %v1122 = vunpack.c.l.b16 %v811
        %v1123 = vunpack.c.h.b16 %v811
        %v1124 = vunpack.c.l.b16 %v812
        %v1125 = vunpack.c.h.b16 %v812
        %v1126 = vunpack.c.l.b16 %v813
        %v1127 = vunpack.c.h.b16 %v813
        %v1128 = vunpack.c.l.b16 %v814
        %v1129 = vunpack.c.h.b16 %v814
        %v1130 = vunpack.c.l.b16 %v815
        %v1131 = vunpack.c.h.b16 %v815
        %v1132 = vunpack.c.l.b16 %v816
        %v1133 = vunpack.c.h.b16 %v816
        %v1134 = vunpack.c.l.b16 %v817
        %v1135 = vunpack.c.h.b16 %v817
        %v1136 = vunpack.c.l.b16 %v818
        %v1137 = vunpack.c.h.b16 %v818
        %v1138 = vunpack.c.l.b16 %v819
        %v1139 = vunpack.c.h.b16 %v819
        %v1140 = vunpack.c.l.b16 %v820
        %v1141 = vunpack.c.h.b16 %v820
        %v1142 = vunpack.c.l.b16 %v821
        %v1143 = vunpack.c.h.b16 %v821
        %v1144 = vunpack.c.l.b16 %v822
        %v1145 = vunpack.c.h.b16 %v822
        %v1146 = vunpack.c.l.b16 %v823
        %v1147 = vunpack.c.h.b16 %v823
        %v1148 = vunpack.c.l.b16 %v824
        %v1149 = vunpack.c.h.b16 %v824
        %v1150 = vunpack.c.l.b16 %v825
        %v1151 = vunpack.c.h.b16 %v825
        %v1152 = vunpack.c.l.b16 %v826
        %v1153 = vunpack.c.h.b16 %v826
        %v1154 = vunpack.c.l.b16 %v827
        %v1155 = vunpack.c.h.b16 %v827
        %v1156 = vunpack.c.l.b16 %v828
        %v1157 = vunpack.c.h.b16 %v828
        %v1158 = vunpack.c.l.b16 %v829
        %v1159 = vunpack.c.h.b16 %v829
        %v1160 = vunpack.c.l.b16 %v830
        %v1161 = vunpack.c.h.b16 %v830
        %v1162 = vunpack.c.l.b16 %v831
        %v1163 = vunpack.c.h.b16 %v831
        %v1164 = vunpack.c.l.b16 %v832
        %v1165 = vunpack.c.h.b16 %v832
        %v1166 = vunpack.c.l.b16 %v833
        %v1167 = vunpack.c.h.b16 %v833
        %v1168 = vunpack.c.l.b16 %v834
        %v1169 = vunpack.c.h.b16 %v834
        %v1170 = vunpack.c.l.b16 %v835
        %v1171 = vunpack.c.h.b16 %v835
        %v1172 = vunpack.c.l.b16 %v836
        %v1173 = vunpack.c.h.b16 %v836
        %v1174 = vunpack.c.l.b16 %v837
        %v1175 = vunpack.c.h.b16 %v837
        %v1176 = vunpack.c.l.b16 %v838
        %v1177 = vunpack.c.h.b16 %v838
        %v1178 = vunpack.c.l.b16 %v839
        %v1179 = vunpack.c.h.b16 %v839
        %v1180 = vunpack.c.l.b16 %v840
        %v1181 = vunpack.c.h.b16 %v840
        %v1182 = vunpack.c.l.b16 %v841
        %v1183 = vunpack.c.h.b16 %v841
        %v1184 = vunpack.c.l.b16 %v842
        %v1185 = vunpack.c.h.b16 %v842
        %v1186 = vunpack.c.l.b16 %v843
        %v1187 = vunpack.c.h.b16 %v843
        %v1188 = vunpack.c.l.b16 %v844
        %v1189 = vunpack.c.h.b16 %v844
        %v1190 = vunpack.c.l.b16 %v845
        %v1191 = vunpack.c.h.b16 %v845
        %v1192 = vunpack.c.l.b16 %v846
        %v1193 = vunpack.c.h.b16 %v846
        %v1194 = vunpack.c.l.b16 %v847
        %v1195 = vunpack.c.h.b16 %v847
        %v1196 = vunpack.c.l.b16 %v848
        %v1197 = vunpack.c.h.b16 %v848
        %v1198 = vunpack.c.l.b16 %v849
        %v1199 = vunpack.c.h.b16 %v849
        %v1200 = vunpack.c.l.b16 %v850
        %v1201 = vunpack.c.h.b16 %v850
        %v1202 = vunpack.c.l.b16 %v851
        %v1203 = vunpack.c.h.b16 %v851
        %v1204 = vunpack.c.l.b16 %v852
        %v1205 = vunpack.c.h.b16 %v852
        %v1206 = vunpack.c.l.b16 %v853
        %v1207 = vunpack.c.h.b16 %v853
        %v1208 = vunpack.c.l.b16 %v854
        %v1209 = vunpack.c.h.b16 %v854
        %v1210 = vunpack.c.l.b16 %v855
        %v1211 = vunpack.c.h.b16 %v855
        %v1212 = vunpack.c.l.b16 %v856
        %v1213 = vunpack.c.h.b16 %v856
        %v1214 = vunpack.c.l.b16 %v857
        %v1215 = vunpack.c.h.b16 %v857
        %v1216 = vunpack.c.l.b16 %v858
        %v1217 = vunpack.c.h.b16 %v858
        %v1218 = vunpack.c.l.b16 %v859
        %v1219 = vunpack.c.h.b16 %v859
        %v1220 = vunpack.c.l.b16 %v860
        %v1221 = vunpack.c.h.b16 %v860
        %v1222 = vunpack.c.l.b16 %v861
        %v1223 = vunpack.c.h.b16 %v861
        %v1224 = vunpack.c.l.b16 %v862
        %v1225 = vunpack.c.h.b16 %v862
        %v1226 = vunpack.c.l.b16 %v863
        %v1227 = vunpack.c.h.b16 %v863
        %v1228 = vunpack.c.l.b16 %v864
        %v1229 = vunpack.c.h.b16 %v864
        %v1230 = vunpack.c.l.b16 %v865
        %v1231 = vunpack.c.h.b16 %v865
        %v1232 = vunpack.c.l.b16 %v866
        %v1233 = vunpack.c.h.b16 %v866
        %v1234 = vunpack.c.l.b16 %v867
        %v1235 = vunpack.c.h.b16 %v867
        %v1236 = vunpack.c.l.b16 %v868
        %v1237 = vunpack.c.h.b16 %v868
        %v1238 = vunpack.c.l.b16 %v869
        %v1239 = vunpack.c.h.b16 %v869
        %v1240 = vunpack.c.l.b16 %v870
        %v1241 = vunpack.c.h.b16 %v870
        %v1242 = vunpack.c.l.b16 %v871
        %v1243 = vunpack.c.h.b16 %v871
        %v1244 = vunpack.c.l.b16 %v872
        %v1245 = vunpack.c.h.b16 %v872
        %v1246 = vunpack.c.l.b16 %v873
        %v1247 = vunpack.c.h.b16 %v873
        %v1248 = vunpack.c.l.b16 %v874
        %v1249 = vunpack.c.h.b16 %v874
        %v1250 = vunpack.c.l.b16 %v875
        %v1251 = vunpack.c.h.b16 %v875
        %v1252 = vunpack.c.l.b16 %v876
        %v1253 = vunpack.c.h.b16 %v876
        %v1254 = vunpack.c.l.b16 %v877
        %v1255 = vunpack.c.h.b16 %v877
        %v1256 = vunpack.c.l.b16 %v878
        %v1257 = vunpack.c.h.b16 %v878
        %v1258 = vunpack.c.l.b16 %v879
        %v1259 = vunpack.c.h.b16 %v879
        %v1260 = vunpack.c.l.b16 %v880
        %v1261 = vunpack.c.h.b16 %v880
        %v1262 = vunpack.c.l.b16 %v881
        %v1263 = vunpack.c.h.b16 %v881
        %v1264 = vunpack.c.l.b16 %v882
        %v1265 = vunpack.c.h.b16 %v882
        %v1266 = vunpack.c.l.b16 %v883
        %v1267 = vunpack.c.h.b16 %v883
        %v1268 = vunpack.c.l.b16 %v884
        %v1269 = vunpack.c.h.b16 %v884
        %v1270 = vunpack.c.l.b16 %v885
        %v1271 = vunpack.c.h.b16 %v885
        %v1272 = vunpack.c.l.b16 %v886
        %v1273 = vunpack.c.h.b16 %v886
        %v1274 = vunpack.c.l.b16 %v887
        %v1275 = vunpack.c.h.b16 %v887
        %v1276 = vunpack.c.l.b16 %v888
        %v1277 = vunpack.c.h.b16 %v888
        %v1278 = vunpack.c.l.b16 %v889
        %v1279 = vunpack.c.h.b16 %v889
        %v1280 = vunpack.c.l.b16 %v890
        %v1281 = vunpack.c.h.b16 %v890
        %v1282 = vunpack.c.l.b16 %v891
        %v1283 = vunpack.c.h.b16 %v891
        %v1284 = vunpack.c.l.b16 %v892
        %v1285 = vunpack.c.h.b16 %v892
        %v1286 = vunpack.c.l.b16 %v893
        %v1287 = vunpack.c.h.b16 %v893
        %v1288 = vunpack.c.l.b16 %v894
        %v1289 = vunpack.c.h.b16 %v894
        %v1290 = vunpack.c.l.b16 %v895
        %v1291 = vunpack.c.h.b16 %v895
        %v1292 = vunpack.c.l.b16 %v896
        %v1293 = vunpack.c.h.b16 %v896
        %v1294 = vunpack.c.l.b16 %v897
        %v1295 = vunpack.c.h.b16 %v897
        %v1296 = vunpack.c.l.b16 %v898
        %v1297 = vunpack.c.h.b16 %v898
        %v1298 = vunpack.c.l.b16 %v899
        %v1299 = vunpack.c.h.b16 %v899
        %v1300 = vunpack.c.l.b16 %v900
        %v1301 = vunpack.c.h.b16 %v900
        %v1302 = vunpack.c.l.b16 %v901
        %v1303 = vunpack.c.h.b16 %v901
        %v1304 = vunpack.c.l.b16 %v902
        %v1305 = vunpack.c.h.b16 %v902
        %v1306 = vunpack.c.l.b16 %v903
        %v1307 = vunpack.c.h.b16 %v903
        %v1308 = vunpack.c.l.b16 %v904
        %v1309 = vunpack.c.h.b16 %v904
        %v1310 = vunpack.c.l.b16 %v905
        %v1311 = vunpack.c.h.b16 %v905
        %v1312 = vunpack.c.l.b16 %v906
        %v1313 = vunpack.c.h.b16 %v906
        %v1314 = vunpack.c.l.b16 %v907
        %v1315 = vunpack.c.h.b16 %v907
        %v1316 = vunpack.c.l.b16 %v908
        %v1317 = vunpack.c.h.b16 %v908
        %v1318 = vunpack.c.l.b16 %v909
        %v1319 = vunpack.c.h.b16 %v909
        %v1320 = vunpack.c.l.b16 %v910
        %v1321 = vunpack.c.h.b16 %v910
        %v1322 = vunpack.c.l.b16 %v911
        %v1323 = vunpack.c.h.b16 %v911
        %v1324 = vpack.c.b16 %v1070, %v1068
        %v1325 = vpack.c.b16 %v1071, %v1069
        %v1326 = vpack.c.b16 %v1074, %v1072
        %v1327 = vpack.c.b16 %v1075, %v1073
        %v1328 = vpack.c.b16 %v1078, %v1076
        %v1329 = vpack.c.b16 %v1079, %v1077
        %v1330 = vpack.c.b16 %v1082, %v1080
        %v1331 = vpack.c.b16 %v1083, %v1081
        %v1332 = vpack.c.b16 %v1086, %v1084
        %v1333 = vpack.c.b16 %v1087, %v1085
        %v1334 = vpack.c.b16 %v1090, %v1088
        %v1335 = vpack.c.b16 %v1091, %v1089
        %v1336 = vpack.c.b16 %v1094, %v1092
        %v1337 = vpack.c.b16 %v1095, %v1093
        %v1338 = vpack.c.b16 %v1098, %v1096
        %v1339 = vpack.c.b16 %v1099, %v1097
        %v1340 = vpack.c.b16 %v1102, %v1100
        %v1341 = vpack.c.b16 %v1103, %v1101
        %v1342 = vpack.c.b16 %v1106, %v1104
        %v1343 = vpack.c.b16 %v1107, %v1105
        %v1344 = vpack.c.b16 %v1110, %v1108
        %v1345 = vpack.c.b16 %v1111, %v1109
        %v1346 = vpack.c.b16 %v1114, %v1112
        %v1347 = vpack.c.b16 %v1115, %v1113
        %v1348 = vpack.c.b16 %v1118, %v1116
        %v1349 = vpack.c.b16 %v1119, %v1117
        %v1350 = vpack.c.b16 %v1122, %v1120
        %v1351 = vpack.c.b16 %v1123, %v1121
        %v1352 = vpack.c.b16 %v1126, %v1124
        %v1353 = vpack.c.b16 %v1127, %v1125
        %v1354 = vpack.c.b16 %v1130, %v1128
        %v1355 = vpack.c.b16 %v1131, %v1129
        %v1356 = vpack.c.b16 %v1134, %v1132
        %v1357 = vpack.c.b16 %v1135, %v1133
        %v1358 = vpack.c.b16 %v1138, %v1136
        %v1359 = vpack.c.b16 %v1139, %v1137
        %v1360 = vpack.c.b16 %v1142, %v1140
        %v1361 = vpack.c.b16 %v1143, %v1141
        %v1362 = vpack.c.b16 %v1146, %v1144
        %v1363 = vpack.c.b16 %v1147, %v1145
        %v1364 = vpack.c.b16 %v1150, %v1148
        %v1365 = vpack.c.b16 %v1151, %v1149
        %v1366 = vpack.c.b16 %v1154, %v1152
        %v1367 = vpack.c.b16 %v1155, %v1153
        %v1368 = vpack.c.b16 %v1158, %v1156
        %v1369 = vpack.c.b16 %v1159, %v1157
        %v1370 = vpack.c.b16 %v1162, %v1160
        %v1371 = vpack.c.b16 %v1163, %v1161
        %v1372 = vpack.c.b16 %v1166, %v1164
        %v1373 = vpack.c.b16 %v1167, %v1165
        %v1374 = vpack.c.b16 %v1170, %v1168
        %v1375 = vpack.c.b16 %v1171, %v1169
        %v1376 = vpack.c.b16 %v1174, %v1172
        %v1377 = vpack.c.b16 %v1175, %v1173
        %v1378 = vpack.c.b16 %v1178, %v1176
        %v1379 = vpack.c.b16 %v1179, %v1177
        %v1380 = vpack.c.b16 %v1182, %v1180
        %v1381 = vpack.c.b16 %v1183, %v1181
        %v1382 = vpack.c.b16 %v1186, %v1184
        %v1383 = vpack.c.b16 %v1187, %v1185
        %v1384 = vpack.c.b16 %v1190, %v1188
        %v1385 = vpack.c.b16 %v1191, %v1189
        %v1386 = vpack.c.b16 %v1194, %v1192
        %v1387 = vpack.c.b16 %v1195, %v1193
        %v1388 = vpack.c.b16 %v1198, %v1196
        %v1389 = vpack.c.b16 %v1199, %v1197
        %v1390 = vpack.c.b16 %v1202, %v1200
        %v1391 = vpack.c.b16 %v1203, %v1201
        %v1392 = vpack.c.b16 %v1206, %v1204
        %v1393 = vpack.c.b16 %v1207, %v1205
        %v1394 = vpack.c.b16 %v1210, %v1208
        %v1395 = vpack.c.b16 %v1211, %v1209
        %v1396 = vpack.c.b16 %v1214, %v1212
        %v1397 = vpack.c.b16 %v1215, %v1213
        %v1398 = vpack.c.b16 %v1218, %v1216
        %v1399 = vpack.c.b16 %v1219, %v1217
        %v1400 = vpack.c.b16 %v1222, %v1220
        %v1401 = vpack.c.b16 %v1223, %v1221
        %v1402 = vpack.c.b16 %v1226, %v1224
        %v1403 = vpack.c.b16 %v1227, %v1225
        %v1404 = vpack.c.b16 %v1230, %v1228
        %v1405 = vpack.c.b16 %v1231, %v1229
        %v1406 = vpack.c.b16 %v1234, %v1232
        %v1407 = vpack.c.b16 %v1235, %v1233
        %v1408 = vpack.c.b16 %v1238, %v1236
        %v1409 = vpack.c.b16 %v1239, %v1237
        %v1410 = vpack.c.b16 %v1242, %v1240
        %v1411 = vpack.c.b16 %v1243, %v1241
        %v1412 = vpack.c.b16 %v1246, %v1244
        %v1413 = vpack.c.b16 %v1247, %v1245
        %v1414 = vpack.c.b16 %v1250, %v1248
        %v1415 = vpack.c.b16 %v1251, %v1249
        %v1416 = vpack.c.b16 %v1254, %v1252
        %v1417 = vpack.c.b16 %v1255, %v1253
        %v1418 = vpack.c.b16 %v1258, %v1256
        %v1419 = vpack.c.b16 %v1259, %v1257
        %v1420 = vpack.c.b16 %v1262, %v1260
        %v1421 = vpack.c.b16 %v1263, %v1261
        %v1422 = vpack.c.b16 %v1266, %v1264
        %v1423 = vpack.c.b16 %v1267, %v1265
        %v1424 = vpack.c.b16 %v1270, %v1268
        %v1425 = vpack.c.b16 %v1271, %v1269
        %v1426 = vpack.c.b16 %v1274, %v1272
        %v1427 = vpack.c.b16 %v1275, %v1273
        %v1428 = vpack.c.b16 %v1278, %v1276
        %v1429 = vpack.c.b16 %v1279, %v1277
        %v1430 = vpack.c.b16 %v1282, %v1280
        %v1431 = vpack.c.b16 %v1283, %v1281
        %v1432 = vpack.c.b16 %v1286, %v1284
        %v1433 = vpack.c.b16 %v1287, %v1285
        %v1434 = vpack.c.b16 %v1290, %v1288
        %v1435 = vpack.c.b16 %v1291, %v1289
        %v1436 = vpack.c.b16 %v1294, %v1292
        %v1437 = vpack.c.b16 %v1295, %v1293
        %v1438 = vpack.c.b16 %v1298, %v1296
        %v1439 = vpack.c.b16 %v1299, %v1297
        %v1440 = vpack.c.b16 %v1302, %v1300
        %v1441 = vpack.c.b16 %v1303, %v1301
        %v1442 = vpack.c.b16 %v1306, %v1304
        %v1443 = vpack.c.b16 %v1307, %v1305
        %v1444 = vpack.c.b16 %v1310, %v1308
        %v1445 = vpack.c.b16 %v1311, %v1309
        %v1446 = vpack.c.b16 %v1314, %v1312
        %v1447 = vpack.c.b16 %v1315, %v1313
        %v1448 = vpack.c.b16 %v1318, %v1316
        %v1449 = vpack.c.b16 %v1319, %v1317
        %v1450 = vpack.c.b16 %v1322, %v1320
        %v1451 = vpack.c.b16 %v1323, %v1321
        %1580 = vmatpush.bf16.msra.mxu0 %v1338
        %1581 = vmatpush.bf16.msra.mxu0 %v1336
        %1582 = vmatpush.bf16.msra.mxu0 %v1334
        %1583 = vmatpush.bf16.msra.mxu0 %v1332
        %1584 = vmatpush.bf16.msra.mxu0 %v1330
        %1585 = vmatpush.bf16.msra.mxu0 %v1328
        %1586 = vmatpush.bf16.msra.mxu0 %v1326
        %1587 = vmatpush.bf16.msra.mxu0 %v1324
        %1588 = vmatmul.bf16.gmra.mxu0 %v924
        %v1589 = vpop.f32.mrf.mxu0
        %v1590 = vadd.f32 0.0, %v1589
        %v1591 = vpop.f32.mrf.mxu0
        %1592 = vdwg.mxu0
        %1593 = vmatpush.bf16.msra.mxu0 %v1354
        %1594 = vmatpush.bf16.msra.mxu0 %v1352
        %1595 = vmatpush.bf16.msra.mxu0 %v1350
        %1596 = vmatpush.bf16.msra.mxu0 %v1348
        %1597 = vmatpush.bf16.msra.mxu0 %v1346
        %1598 = vmatpush.bf16.msra.mxu0 %v1344
        %1599 = vmatpush.bf16.msra.mxu0 %v1342
        %1600 = vmatpush.bf16.msra.mxu0 %v1340
        %1601 = vmatmul.bf16.gmra.mxu0 %v925
        %v1602 = vpop.f32.mrf.mxu0
        %v1603 = vadd.f32 %v1590, %v1602
        %v1604 = vpop.f32.mrf.mxu0
        %1605 = vdwg.mxu0
        %1606 = vmatpush.bf16.msra.mxu0 %v1370
        %1607 = vmatpush.bf16.msra.mxu0 %v1368
        %1608 = vmatpush.bf16.msra.mxu0 %v1366
        %1609 = vmatpush.bf16.msra.mxu0 %v1364
        %1610 = vmatpush.bf16.msra.mxu0 %v1362
        %1611 = vmatpush.bf16.msra.mxu0 %v1360
        %1612 = vmatpush.bf16.msra.mxu0 %v1358
        %1613 = vmatpush.bf16.msra.mxu0 %v1356
        %1614 = vmatmul.bf16.gmra.mxu0 %v926
        %v1615 = vpop.f32.mrf.mxu0
        %v1616 = vadd.f32 %v1603, %v1615
        %v1617 = vpop.f32.mrf.mxu0
        %1618 = vdwg.mxu0
        %1619 = vmatpush.bf16.msra.mxu0 %v1386
        %1620 = vmatpush.bf16.msra.mxu0 %v1384
        %1621 = vmatpush.bf16.msra.mxu0 %v1382
        %1622 = vmatpush.bf16.msra.mxu0 %v1380
        %1623 = vmatpush.bf16.msra.mxu0 %v1378
        %1624 = vmatpush.bf16.msra.mxu0 %v1376
        %1625 = vmatpush.bf16.msra.mxu0 %v1374
        %1626 = vmatpush.bf16.msra.mxu0 %v1372
        %1627 = vmatmul.bf16.gmra.mxu0 %v927
        %v1628 = vpop.f32.mrf.mxu0
        %v1629 = vadd.f32 %v1616, %v1628
        %v1630 = vpop.f32.mrf.mxu0
        %1631 = vdwg.mxu0
        %1632 = vmatpush.bf16.msra.mxu0 %v1402
        %1633 = vmatpush.bf16.msra.mxu0 %v1400
        %1634 = vmatpush.bf16.msra.mxu0 %v1398
        %1635 = vmatpush.bf16.msra.mxu0 %v1396
        %1636 = vmatpush.bf16.msra.mxu0 %v1394
        %1637 = vmatpush.bf16.msra.mxu0 %v1392
        %1638 = vmatpush.bf16.msra.mxu0 %v1390
        %1639 = vmatpush.bf16.msra.mxu0 %v1388
        %1640 = vmatmul.bf16.gmra.mxu0 %v928
        %v1641 = vpop.f32.mrf.mxu0
        %v1642 = vadd.f32 %v1629, %v1641
        %v1643 = vpop.f32.mrf.mxu0
        %1644 = vdwg.mxu0
        %1645 = vmatpush.bf16.msra.mxu0 %v1418
        %1646 = vmatpush.bf16.msra.mxu0 %v1416
        %1647 = vmatpush.bf16.msra.mxu0 %v1414
        %1648 = vmatpush.bf16.msra.mxu0 %v1412
        %1649 = vmatpush.bf16.msra.mxu0 %v1410
        %1650 = vmatpush.bf16.msra.mxu0 %v1408
        %1651 = vmatpush.bf16.msra.mxu0 %v1406
        %1652 = vmatpush.bf16.msra.mxu0 %v1404
        %1653 = vmatmul.bf16.gmra.mxu0 %v929
        %v1654 = vpop.f32.mrf.mxu0
        %v1655 = vadd.f32 %v1642, %v1654
        %v1656 = vpop.f32.mrf.mxu0
        %1657 = vdwg.mxu0
        %1658 = vmatpush.bf16.msra.mxu0 %v1434
        %1659 = vmatpush.bf16.msra.mxu0 %v1432
        %1660 = vmatpush.bf16.msra.mxu0 %v1430
        %1661 = vmatpush.bf16.msra.mxu0 %v1428
        %1662 = vmatpush.bf16.msra.mxu0 %v1426
        %1663 = vmatpush.bf16.msra.mxu0 %v1424
        %1664 = vmatpush.bf16.msra.mxu0 %v1422
        %1665 = vmatpush.bf16.msra.mxu0 %v1420
        %1666 = vmatmul.bf16.gmra.mxu0 %v930
        %v1667 = vpop.f32.mrf.mxu0
        %v1668 = vadd.f32 %v1655, %v1667
        %v1669 = vpop.f32.mrf.mxu0
        %1670 = vdwg.mxu0
        %1671 = vmatpush.bf16.msra.mxu0 %v1450
        %1672 = vmatpush.bf16.msra.mxu0 %v1448
        %1673 = vmatpush.bf16.msra.mxu0 %v1446
        %1674 = vmatpush.bf16.msra.mxu0 %v1444
        %1675 = vmatpush.bf16.msra.mxu0 %v1442
        %1676 = vmatpush.bf16.msra.mxu0 %v1440
        %1677 = vmatpush.bf16.msra.mxu0 %v1438
        %1678 = vmatpush.bf16.msra.mxu0 %v1436
        %1679 = vmatmul.bf16.gmra.mxu0 %v931
        %v1680 = vpop.f32.mrf.mxu0
        %v1681 = vadd.f32 %v1668, %v1680
        %v1682 = vpop.f32.mrf.mxu0
        %1683 = vdwg.mxu0
        %1684 = vmatpush.bf16.msra.mxu0 %v1339
        %1685 = vmatpush.bf16.msra.mxu0 %v1337
        %1686 = vmatpush.bf16.msra.mxu0 %v1335
        %1687 = vmatpush.bf16.msra.mxu0 %v1333
        %1688 = vmatpush.bf16.msra.mxu0 %v1331
        %1689 = vmatpush.bf16.msra.mxu0 %v1329
        %1690 = vmatpush.bf16.msra.mxu0 %v1327
        %1691 = vmatpush.bf16.msra.mxu0 %v1325
        %1692 = vmatmul.bf16.gmra.mxu0 %v924
        %v1693 = vpop.f32.mrf.mxu0
        %v1694 = vadd.f32 0.0, %v1693
        %v1695 = vpop.f32.mrf.mxu0
        %1696 = vdwg.mxu0
        %1697 = vmatpush.bf16.msra.mxu0 %v1355
        %1698 = vmatpush.bf16.msra.mxu0 %v1353
        %1699 = vmatpush.bf16.msra.mxu0 %v1351
        %1700 = vmatpush.bf16.msra.mxu0 %v1349
        %1701 = vmatpush.bf16.msra.mxu0 %v1347
        %1702 = vmatpush.bf16.msra.mxu0 %v1345
        %1703 = vmatpush.bf16.msra.mxu0 %v1343
        %1704 = vmatpush.bf16.msra.mxu0 %v1341
        %1705 = vmatmul.bf16.gmra.mxu0 %v925
        %v1706 = vpop.f32.mrf.mxu0
        %v1707 = vadd.f32 %v1694, %v1706
        %v1708 = vpop.f32.mrf.mxu0
        %1709 = vdwg.mxu0
        %1710 = vmatpush.bf16.msra.mxu0 %v1371
        %1711 = vmatpush.bf16.msra.mxu0 %v1369
        %1712 = vmatpush.bf16.msra.mxu0 %v1367
        %1713 = vmatpush.bf16.msra.mxu0 %v1365
        %1714 = vmatpush.bf16.msra.mxu0 %v1363
        %1715 = vmatpush.bf16.msra.mxu0 %v1361
        %1716 = vmatpush.bf16.msra.mxu0 %v1359
        %1717 = vmatpush.bf16.msra.mxu0 %v1357
        %1718 = vmatmul.bf16.gmra.mxu0 %v926
        %v1719 = vpop.f32.mrf.mxu0
        %v1720 = vadd.f32 %v1707, %v1719
        %v1721 = vpop.f32.mrf.mxu0
        %1722 = vdwg.mxu0
        %1723 = vmatpush.bf16.msra.mxu0 %v1387
        %1724 = vmatpush.bf16.msra.mxu0 %v1385
        %1725 = vmatpush.bf16.msra.mxu0 %v1383
        %1726 = vmatpush.bf16.msra.mxu0 %v1381
        %1727 = vmatpush.bf16.msra.mxu0 %v1379
        %1728 = vmatpush.bf16.msra.mxu0 %v1377
        %1729 = vmatpush.bf16.msra.mxu0 %v1375
        %1730 = vmatpush.bf16.msra.mxu0 %v1373
        %1731 = vmatmul.bf16.gmra.mxu0 %v927
        %v1732 = vpop.f32.mrf.mxu0
        %v1733 = vadd.f32 %v1720, %v1732
        %v1734 = vpop.f32.mrf.mxu0
        %1735 = vdwg.mxu0
        %1736 = vmatpush.bf16.msra.mxu0 %v1403
        %1737 = vmatpush.bf16.msra.mxu0 %v1401
        %1738 = vmatpush.bf16.msra.mxu0 %v1399
        %1739 = vmatpush.bf16.msra.mxu0 %v1397
        %1740 = vmatpush.bf16.msra.mxu0 %v1395
        %1741 = vmatpush.bf16.msra.mxu0 %v1393
        %1742 = vmatpush.bf16.msra.mxu0 %v1391
        %1743 = vmatpush.bf16.msra.mxu0 %v1389
        %1744 = vmatmul.bf16.gmra.mxu0 %v928
        %v1745 = vpop.f32.mrf.mxu0
        %v1746 = vadd.f32 %v1733, %v1745
        %v1747 = vpop.f32.mrf.mxu0
        %1748 = vdwg.mxu0
        %1749 = vmatpush.bf16.msra.mxu0 %v1419
        %1750 = vmatpush.bf16.msra.mxu0 %v1417
        %1751 = vmatpush.bf16.msra.mxu0 %v1415
        %1752 = vmatpush.bf16.msra.mxu0 %v1413
        %1753 = vmatpush.bf16.msra.mxu0 %v1411
        %1754 = vmatpush.bf16.msra.mxu0 %v1409
        %1755 = vmatpush.bf16.msra.mxu0 %v1407
        %1756 = vmatpush.bf16.msra.mxu0 %v1405
        %1757 = vmatmul.bf16.gmra.mxu0 %v929
        %v1758 = vpop.f32.mrf.mxu0
        %v1759 = vadd.f32 %v1746, %v1758
        %v1760 = vpop.f32.mrf.mxu0
        %1761 = vdwg.mxu0
        %1762 = vmatpush.bf16.msra.mxu0 %v1435
        %1763 = vmatpush.bf16.msra.mxu0 %v1433
        %1764 = vmatpush.bf16.msra.mxu0 %v1431
        %1765 = vmatpush.bf16.msra.mxu0 %v1429
        %1766 = vmatpush.bf16.msra.mxu0 %v1427
        %1767 = vmatpush.bf16.msra.mxu0 %v1425
        %1768 = vmatpush.bf16.msra.mxu0 %v1423
        %1769 = vmatpush.bf16.msra.mxu0 %v1421
        %1770 = vmatmul.bf16.gmra.mxu0 %v930
        %v1771 = vpop.f32.mrf.mxu0
        %v1772 = vadd.f32 %v1759, %v1771
        %v1773 = vpop.f32.mrf.mxu0
        %1774 = vdwg.mxu0
        %1775 = vmatpush.bf16.msra.mxu0 %v1451
        %1776 = vmatpush.bf16.msra.mxu0 %v1449
        %1777 = vmatpush.bf16.msra.mxu0 %v1447
        %1778 = vmatpush.bf16.msra.mxu0 %v1445
        %1779 = vmatpush.bf16.msra.mxu0 %v1443
        %1780 = vmatpush.bf16.msra.mxu0 %v1441
        %1781 = vmatpush.bf16.msra.mxu0 %v1439
        %1782 = vmatpush.bf16.msra.mxu0 %v1437
        %1783 = vmatmul.bf16.gmra.mxu0 %v931
        %v1784 = vpop.f32.mrf.mxu0
        %v1785 = vadd.f32 %v1772, %v1784
        %v1786 = vpop.f32.mrf.mxu0
        %1787 = vdwg.mxu0
        %v1788 = vrot.slane %v1681, 4
        %v1789 = vadd.f32 %v1681, %v1788
        %v1790 = vrot.slane %v1789, 2
        %v1791 = vadd.f32 %v1789, %v1790
        %v1792 = vrot.slane %v1791, 1
        %v1793 = vadd.f32 %v1791, %v1792
        %v1794 = vrot.slane %v1785, 4
        %v1795 = vadd.f32 %v1785, %v1794
        %v1796 = vrot.slane %v1795, 2
        %v1797 = vadd.f32 %v1795, %v1796
        %v1798 = vrot.slane %v1797, 1
        %v1799 = vadd.f32 %v1797, %v1798
        %v1800 = vmul.f32 %v1681, %v1681
        %v1801 = vmul.f32 %v1785, %v1785
        %v1802 = vrot.slane %v1800, 4
        %v1803 = vadd.f32 %v1800, %v1802
        %v1804 = vrot.slane %v1803, 2
        %v1805 = vadd.f32 %v1803, %v1804
        %v1806 = vrot.slane %v1805, 1
        %v1807 = vadd.f32 %v1805, %v1806
        %v1808 = vrot.slane %v1801, 4
        %v1809 = vadd.f32 %v1801, %v1808
        %v1810 = vrot.slane %v1809, 2
        %v1811 = vadd.f32 %v1809, %v1810
        %v1812 = vrot.slane %v1811, 1
        %v1813 = vadd.f32 %v1811, %v1812
        %v1814 = vmul.f32 %v1793, 0.125
        %v1815 = vmul.f32 %v1799, 0.125
        %v1816 = vmul.f32 %v1807, 0.125
        %v1817 = vmul.f32 %v1813, 0.125
        %v1818 = vmul.f32 %v1814, %v1814
        %v1819 = vmul.f32 %v1815, %v1815
        %v1820 = vsub.f32 %v1816, %v1818
        %v1821 = vsub.f32 %v1817, %v1819
        %v1822 = vadd.f32 %v1820, 1e-05
        %v1823 = vadd.f32 %v1821, 1e-05
        %v1824 = vrsqrt.pop %v1822
        %v1825 = vmul.f32 %v1824, %v1822
        %v1826 = vmul.f32 %v1825, %v1824
        %v1827 = vmul.f32 0.5, %v1826
        %v1828 = vsub.f32 1.5, %v1827
        %v1829 = vmul.f32 %v1824, %v1828
        %vm1830 = vweird.f32 %v1822
        %vm1831 = vweird.f32 %v1824
        %vm1832 = vmor %vm1830, %vm1831
        %v1833 = vsel %vm1832, %v1824, %v1829
        %v1834 = vrsqrt.pop %v1823
        %v1835 = vmul.f32 %v1834, %v1823
        %v1836 = vmul.f32 %v1835, %v1834
        %v1837 = vmul.f32 0.5, %v1836
        %v1838 = vsub.f32 1.5, %v1837
        %v1839 = vmul.f32 %v1834, %v1838
        %vm1840 = vweird.f32 %v1823
        %vm1841 = vweird.f32 %v1834
        %vm1842 = vmor %vm1840, %vm1841
        %v1843 = vsel %vm1842, %v1834, %v1839
        %v1844 = vld [vmem:[%s772] sm:$0x3]
        %v1847 = vrot.slane %v1843, 7
        %vm1848 = vcmask 1040384
        %v1849 = vsel %vm1848, %v1833, %v1847
        %v1851 = vmul.f32 %v1844, %v1849
        %v1852 = vld [vmem:[%s777] sm:$0x3]
        %v1854 = vperm.slane %v1851, 0
        %v1855 = vperm.slane %v1851, 1
        %v1858 = vmul.f32 %v1814, %v1854
        %v1859 = vmul.f32 %v1815, %v1855
        %v1862 = vrot.slane %v1859, 7
        %v1863 = vsel %vm1848, %v1858, %v1862
        %v1865 = vsub.f32 %v1852, %v1863
        %v1866 = vmul.f32 %v1681, %v1854
        %v1867 = vmul.f32 %v1785, %v1855
        %v1869 = vperm.slane %v1865, 0
        %v1870 = vperm.slane %v1865, 1
        %v1873 = vadd.f32 %v1866, %v1869
        %v1874 = vadd.f32 %v1867, %v1870
        %1875 = vst [vmem:[%s767] sm:$0xff] %v1873
        %1876 = vst [vmem:[%s767 + $0x8] sm:$0xff] %v1874
        %s1877 = sand.u32 %s125, 1
        %s1878 = scalar_lea.sflag [#allocation4], %s1877
        %s1879 = sand.u32 %s125, 1
        %s1880 = smul.addr %s1879, 16
        %s1881 = scalar_lea.vmem [#allocation3], %s1880
        // Predicated region
        $region75: #{classblock_arc_forward.1} parent=69 // pred_check
          %p1882 = pneg %p135
        $region76: #{classblock_arc_forward.1} parent=69 // pred_check_branch
          %1884 = sbr.rel (%p1882) target = $region78
        $region77: #{classblock_arc_forward.1} parent=69 // pred_region
          %s1885 = smul.u32 2, %s18
          %1887 = vsyncadd %s1878, 0
          %s1888 = smul.addr %s1885, 8
          %s1889 = scalar_lea.hbm %s4, %s1888
          %s1891 = sshll.u32 %s1881, 4
          %s1892 = int_to_ptr.vmem [resolvable:$true] %s1891
          %s1893 = sshll.u32 %s1889, 4
          %s1894 = int_to_ptr.hbm [resolvable:$true] %s1893
          %1896 = dma.vmem_to_hbm [thread:$0]  %s1892, 256, %s1894, %s1878
        $region78: #{classblock_arc_forward.1} parent=69 // pred_fallthru
          _
      $region70: #{classblock_arc_forward.1} parent=5 // pred_fallthru
        _
      %p1897 = scmp.le.s32.totalorder 2, %s13
      // Predicated region
      $region79: #{classblock_arc_forward.1} parent=5 // pred_check
        %p1898 = pneg %p1897
      $region80: #{classblock_arc_forward.1} parent=5 // pred_check_branch
        %1900 = sbr.rel (%p1898) target = $region82
      $region81: #{classblock_arc_forward.1} parent=5 // pred_region
        %s1901 = ssub.s32 %s13, 2
        // Predicated region
        $region83: #{classblock_arc_forward.1} parent=81 // pred_check
          %p1902 = pneg %p141
        $region84: #{classblock_arc_forward.1} parent=81 // pred_check_branch
          %1904 = sbr.rel (%p1902) target = $region86
        $region85: #{classblock_arc_forward.1} parent=81 // pred_region
          %s1905 = sand.u32 %s126, 1
          %s1906 = scalar_lea.sflag [#allocation4], %s1905
          %s1907 = sand.u32 %s126, 1
          %s1908 = smul.addr %s1907, 16
          %s1909 = scalar_lea.vmem [#allocation3], %s1908
          %1911 = dma.done %s1906, 256
        $region86: #{classblock_arc_forward.1} parent=81 // pred_fallthru
          _
      $region82: #{classblock_arc_forward.1} parent=5 // pred_fallthru
        _
    $region6: #{classblock_arc_forward.1} parent=1 // loop_footer
      %s17 = sadd.s32 1, %s13
    $region7: #{classblock_arc_forward.1} parent=1 // loop_footer_branch
      %12 = sbr.rel target = $region3
    $region8: #{classblock_arc_forward.1} parent=1 // loop_exit
      _
    %1912 = vsyncpa [#allocation4], 1
    %s1913 = scalar_lea.sflag [#allocation4], 1
    %1914 = vsyncpa %s1913, 1

</llo_original>
